<compile_context>
chip_gen: v6e
topology: v6e:2x2x1
jax: 0.10.0
libtpu: 0.0.40
codegen_flags: <defaults>
</compile_context>

<pallas_src>
import functools

import jax
import jax.numpy as jnp
from jax import lax
from jax.experimental import pallas as pl
from jax.experimental.pallas import tpu as pltpu


def _round_up(v, m):
    return (v + m - 1) // m * m


def _tpu_generation():
    """Best-effort TPU generation detection (0 = unknown)."""
    try:
        kind = jax.devices()[0].device_kind.lower()
    except Exception:
        return 0
    for gen in (7, 6, 5, 4, 3):
        if f"v{gen}" in kind or f"tpu{gen}" in kind:
            return gen
    return 0


def _inverted_residual_kernel(x_ref, w1_ref, wdw_ref, b2_ref, w3_ref, b3_ref,
                              o_ref, h_ref, *, K, stride, tile_ho, w_acc,
                              w_out_pad, pad, apply_residual):
    """One (image, output-row strip) per grid step.

    x_ref : (1, Hp, Wal, Cin_p) bf16 -- whole spatially/lane-padded image,
            resident across the strip axis.  Carries an extra 'ones' channel
            (BN1 bias) that is 0 on padding pixels, so the expand output is
            exactly 0 on the halo (= the depthwise zero padding).
    h_ref : (halo_h, Wal, Cmid_p) f32 VMEM scratch for the expand output.
    o_ref : (1, tile_ho, w_out_pad, Cout_p) output strip (bf16).
    """
    halo_h, Wal, Cmid_p = h_ref.shape
    Cin_p = x_ref.shape[-1]
    Cout_p = w3_ref.shape[1]

    t = pl.program_id(1)
    row0 = t * (tile_ho * stride)          # first padded input row of this strip

    # ---- 1x1 expand conv on the MXU (BN1 scale folded into w1, BN1 bias on the
    # 'ones' channel) + ReLU, staged into VMEM scratch for the depthwise taps.
    xs = x_ref[0, pl.ds(row0, halo_h)]                         # (halo_h, Wal, Cin_p)
    h = jnp.dot(xs.reshape(halo_h * Wal, Cin_p), w1_ref[...],
                preferred_element_type=jnp.float32)
    h_ref[...] = jnp.maximum(h, 0.0).reshape(halo_h, Wal, Cmid_p)

    # ---- depthwise KxK (BN2 scale folded into the taps): K*K shifted loads
    # from the h scratch (vld slots), f32 multiply-accumulate on the VPU.
    # Rows are read with the conv stride along the outer H axis; width stays
    # dense and is subsampled (stride 2) just before the project matmul.
    taps = wdw_ref[...]                                        # (K*K, Cmid_p) f32
    acc = jnp.zeros((tile_ho, w_acc, Cmid_p), jnp.float32)
    for dy in range(K):
        rows = (pl.ds(dy, tile_ho) if stride == 1
                else pl.ds(dy, tile_ho, stride=stride))
        for dx in range(K):
            i = dy * K + dx
            acc = acc + h_ref[rows, pl.ds(dx, w_acc)] * taps[i:i + 1, :]
    h2 = jnp.maximum(acc + b2_ref[...], 0.0)                   # (tile_ho, w_acc, Cmid_p)
    if stride == 2:
        h2 = h2[:, ::2, :]                                     # in-kernel W subsample

    # ---- 1x1 project conv on the MXU (BN3 scale folded into w3) + BN3 bias.
    y = jnp.dot(h2.reshape(tile_ho * w_out_pad, Cmid_p).astype(jnp.bfloat16),
                w3_ref[...], preferred_element_type=jnp.float32)
    y = (y + b3_ref[...]).reshape(tile_ho, w_out_pad, Cout_p)

    if apply_residual:
        # stride == 1 and Cin == Cout.  The 'ones' channel (index Cin == Cout)
        # only contaminates padded output channels, sliced away in the wrapper.
        xr = x_ref[0, pl.ds(row0 + pad, tile_ho), pl.ds(pad, w_out_pad),
                   pl.ds(0, Cout_p)]
        y = y + xr.astype(jnp.float32)

    o_ref[0] = y.astype(o_ref.dtype)


def inverted_residual(x_nchw, params, *, kernel_size, stride, tile_h=8):
    """Forward of `_InvertedResidual`. x_nchw: (N, Cin, H, W) float32.

    params = (w1, s1, b1, wdw, s2, b2, w3, s3, b3) with
      w1: (Cin, Cmid), wdw: (K*K, Cmid) row-major (dy, dx) taps, w3: (Cmid, Cout),
      and per-channel BN (scale, bias) pairs already folded from
      (gamma, beta, running_mean, running_var).
    """
    w1, s1, b1, wdw, s2, b2, w3, s3, b3 = params
    N, Cin, H, W = x_nchw.shape
    Cmid, Cout = w1.shape[1], w3.shape[1]
    K = kernel_size
    pad = K // 2
    assert stride in (1, 2) and K in (3, 5)
    apply_residual = (Cin == Cout) and (stride == 1)

    LANE = 128
    SUB_F32, SUB_BF16 = 8, 16
    Cin_p = _round_up(Cin + 1, LANE)      # +1: bias / interior-indicator channel
    Cmid_p = _round_up(Cmid, LANE)
    Cout_p = _round_up(Cout, LANE)

    # ---- strip geometry (output rows per grid step + input-row halo) ----
    H_out = -(-H // stride)
    W_out = -(-W // stride)
    tile_ho = max(1, min(tile_h, H_out))
    n_strips = -(-H_out // tile_ho)
    halo_h = (tile_ho - 1) * stride + K
    w_out_pad = _round_up(W_out, SUB_F32)       # sublane-dense width through h2
    w_acc = w_out_pad * stride                  # dense depthwise width
    Wal = _round_up(max(W + 2 * pad, w_acc + K - 1), SUB_BF16)
    Hp = max((n_strips * tile_ho - 1) * stride + K, H + 2 * pad)

    f32, bf16 = jnp.float32, jnp.bfloat16
    gen = _tpu_generation()
    if gen >= 7:
        vmem_limit = 48 * 1024 * 1024           # v7x: 64 MiB physical per TC
    elif gen >= 4:
        vmem_limit = 96 * 1024 * 1024           # v4/v5e/v6e: 128 MiB physical
    else:
        vmem_limit = None                       # unknown: keep compiler default

    # ---- fold BN scales into conv weights, zero-pad everything lane-dense ----
    w1a = jnp.zeros((Cin_p, Cmid_p), f32)
    w1a = w1a.at[:Cin, :Cmid].set(w1 * s1.reshape(1, Cmid))
    w1a = w1a.at[Cin, :Cmid].set(b1.reshape(Cmid))            # BN1 bias row
    w1a = w1a.astype(bf16)

    wdwf = jnp.zeros((K * K, Cmid_p), f32).at[:, :Cmid].set(wdw * s2.reshape(1, Cmid))
    b2p = jnp.zeros((1, Cmid_p), f32).at[:, :Cmid].set(b2.reshape(1, Cmid))

    w3f = (jnp.zeros((Cmid_p, Cout_p), f32)
           .at[:Cmid, :Cout].set(w3 * s3.reshape(1, Cout)).astype(bf16))
    b3p = jnp.zeros((1, Cout_p), f32).at[:, :Cout].set(b3.reshape(1, Cout))

    # ---- NCHW -> NHWC, spatial halo + lane padding, built directly in bf16 ----
    # The 'ones' channel is 1.0 only on real pixels, so the expand output is
    # exactly zero on the halo (= depthwise zero padding), no masking needed.
    xp = jnp.zeros((N, Hp, Wal, Cin_p), bf16)
    xp = xp.at[:, pad:pad + H, pad:pad + W, :Cin].set(
        jnp.transpose(x_nchw, (0, 2, 3, 1)).astype(bf16))
    xp = xp.at[:, pad:pad + H, pad:pad + W, Cin].set(1.0)

    kern = functools.partial(_inverted_residual_kernel, K=K, stride=stride,
                             tile_ho=tile_ho, w_acc=w_acc, w_out_pad=w_out_pad,
                             pad=pad, apply_residual=apply_residual)

    def rep(a):  # whole-array block, replicated across both grid axes
        zero = (0,) * a.ndim
        return pl.BlockSpec(a.shape, lambda n, t, _z=zero: _z)

    grid_spec = pltpu.PrefetchScalarGridSpec(
        num_scalar_prefetch=0,
        grid=(N, n_strips),
        in_specs=[
            # Whole padded image resident across the strip axis (a few MiB max
            # for MNASNet shapes); strip windows are sliced in-kernel.
            pl.BlockSpec((1, Hp, Wal, Cin_p), lambda n, t: (n, 0, 0, 0)),
            rep(w1a), rep(wdwf), rep(b2p), rep(w3f), rep(b3p),
        ],
        out_specs=pl.BlockSpec((1, tile_ho, w_out_pad, Cout_p),
                               lambda n, t: (n, t, 0, 0)),
        scratch_shapes=[pltpu.VMEM((halo_h, Wal, Cmid_p), f32)],
    )

    flops = N * n_strips * (
        2 * halo_h * Wal * Cin_p * Cmid_p                 # expand matmul
        + 2 * tile_ho * w_acc * K * K * Cmid_p            # depthwise taps
        + 2 * tile_ho * w_out_pad * Cmid_p * Cout_p)      # project matmul
    bytes_accessed = (xp.size * 2
                      + N * n_strips * tile_ho * w_out_pad * Cout_p * 2
                      + w1a.size * 2 + w3f.size * 2
                      + (wdwf.size + b2p.size + b3p.size) * 4)

    out = pl.pallas_call(
        kern,
        out_shape=jax.ShapeDtypeStruct((N, n_strips * tile_ho, w_out_pad, Cout_p),
                                       bf16),
        grid_spec=grid_spec,
        compiler_params=pltpu.CompilerParams(
            dimension_semantics=("parallel", "parallel"),
            vmem_limit_bytes=vmem_limit),
        cost_estimate=pl.CostEstimate(flops=int(flops), transcendentals=0,
                                      bytes_accessed=int(bytes_accessed)),
    )(xp, w1a, wdwf, b2p, w3f, b3p)

    # Padded rows / columns / channels are sliced away here.
    out = out[:, :H_out, :W_out, :Cout].astype(f32)
    return jnp.transpose(out, (0, 3, 1, 2))   # NHWC -> NCHW


def _reference_nchw(x, params, *, kernel_size, stride):
    """Pure-XLA reference (NCHW), mirrors the PyTorch forward (eval-mode BN)."""
    w1, s1, b1, wdw, s2, b2, w3, s3, b3 = params
    Cin = x.shape[1]
    Cmid, Cout = w1.shape[1], w3.shape[1]
    K = kernel_size
    pad = K // 2
    dn = ('NCHW', 'OIHW', 'NCHW')
    hi = lax.Precision.HIGHEST

    W1 = jnp.transpose(w1, (1, 0))[:, :, None, None]               # (Cmid,Cin,1,1)
    y = lax.conv_general_dilated(x, W1, (1, 1), 'VALID',
                                 dimension_numbers=dn, precision=hi)
    y = jnp.maximum(y * s1.reshape(1, -1, 1, 1) + b1.reshape(1, -1, 1, 1), 0.0)

    Wd = jnp.transpose(wdw.reshape(K, K, Cmid), (2, 0, 1))[:, None, :, :]
    y = lax.conv_general_dilated(y, Wd, (stride, stride),
                                 [(pad, pad), (pad, pad)],
                                 dimension_numbers=dn,
                                 feature_group_count=Cmid, precision=hi)
    y = jnp.maximum(y * s2.reshape(1, -1, 1, 1) + b2.reshape(1, -1, 1, 1), 0.0)

    W3 = jnp.transpose(w3, (1, 0))[:, :, None, None]               # (Cout,Cmid,1,1)
    y = lax.conv_general_dilated(y, W3, (1, 1), 'VALID',
                                 dimension_numbers=dn, precision=hi)
    y = y * s3.reshape(1, -1, 1, 1) + b3.reshape(1, -1, 1, 1)

    if Cin == Cout and stride == 1:
        y = y + x
    return y


if __name__ == "__main__":
    def bn_fold(k, C):
        kg, kb, km, kv = jax.random.split(k, 4)
        gamma = 1.0 + 0.1 * jax.random.normal(kg, (C,), jnp.float32)
        beta = 0.1 * jax.random.normal(kb, (C,), jnp.float32)
        mean = 0.1 * jax.random.normal(km, (C,), jnp.float32)
        var = jax.random.uniform(kv, (C,), jnp.float32, minval=0.5, maxval=1.5)
        scale = gamma / jnp.sqrt(var + 1e-5)
        bias = beta - mean * scale
        return scale, bias

    def bf16_round(a):  # share the bf16 input rounding between kernel and reference
        return a.astype(jnp.bfloat16).astype(jnp.float32)

    key = jax.random.PRNGKey(0)
    configs = [
        dict(N=2, Cin=4, Cout=4, H=16, W=16, K=3, stride=1, expansion=3),   # residual, 2 strips
        dict(N=2, Cin=4, Cout=8, H=16, W=16, K=3, stride=2, expansion=3),   # stride 2
        dict(N=1, Cin=4, Cout=6, H=16, W=16, K=5, stride=1, expansion=2),   # 5x5 kernel
        dict(N=1, Cin=5, Cout=5, H=12, W=12, K=3, stride=1, expansion=4),   # ragged W, partial strip
        dict(N=1, Cin=5, Cout=10, H=12, W=12, K=3, stride=2, expansion=4),  # ragged + stride 2
    ]

    for cfg in configs:
        N, Cin, Cout = cfg["N"], cfg["Cin"], cfg["Cout"]
        H, W, K, stride = cfg["H"], cfg["W"], cfg["K"], cfg["stride"]
        Cmid = Cin * cfg["expansion"]

        key, *ks = jax.random.split(key, 8)
        w1 = bf16_round(0.3 * jax.random.normal(ks[0], (Cin, Cmid), jnp.float32))
        wdw = bf16_round(0.3 * jax.random.normal(ks[1], (K * K, Cmid), jnp.float32))
        w3 = bf16_round(0.3 * jax.random.normal(ks[2], (Cmid, Cout), jnp.float32))
        s1, b1 = bn_fold(ks[3], Cmid)
        s2, b2 = bn_fold(ks[4], Cmid)
        s3, b3 = bn_fold(ks[5], Cout)
        params = (w1, s1, b1, wdw, s2, b2, w3, s3, b3)

        x = bf16_round(jax.random.normal(ks[6], (N, Cin, H, W), jnp.float32))

        out = inverted_residual(x, params, kernel_size=K, stride=stride)
        out = jax.block_until_ready(out)

        ref = _reference_nchw(x, params, kernel_size=K, stride=stride)
        assert out.shape == ref.shape, (cfg, out.shape, ref.shape)
        max_err = float(jnp.max(jnp.abs(out - ref)))
        assert jnp.allclose(out, ref, atol=2e-2, rtol=2e-2), (cfg, max_err)

    print("KERNEL_OK")
</pallas_src>

<mosaic_0001>
module attributes {stable_mosaic.version = 11 : i64} {
  func.func @_inverted_residual_kernel(%arg0: i32, %arg1: i32, %arg2: memref<1x18x32x128xbf16, #tpu.memory_space<vmem>>, %arg3: memref<128x128xbf16, #tpu.memory_space<vmem>>, %arg4: memref<9x128xf32, #tpu.memory_space<vmem>>, %arg5: memref<1x128xf32, #tpu.memory_space<vmem>>, %arg6: memref<128x128xbf16, #tpu.memory_space<vmem>>, %arg7: memref<1x128xf32, #tpu.memory_space<vmem>>, %arg8: memref<1x8x16x128xbf16, #tpu.memory_space<vmem>>, %arg9: memref<10x32x128xf32, #tpu.memory_space<vmem>>) attributes {dimension_semantics = [#tpu.dimension_semantics<parallel>, #tpu.dimension_semantics<parallel>], iteration_bounds = array<i64: 2, 2>, scalar_prefetch = 0 : i64, scratch_operands = 1 : i64, tpu.core_type = #tpu.core_type<tc>, window_params = [{transform_indices = @transform_0, window_bounds = array<i64: 1, 18, 32, 128>}, {pipeline_mode = #tpu.pipeline_mode<synchronous>, transform_indices = @transform_1, window_bounds = array<i64: 128, 128>}, {pipeline_mode = #tpu.pipeline_mode<synchronous>, transform_indices = @transform_2, window_bounds = array<i64: 9, 128>}, {pipeline_mode = #tpu.pipeline_mode<synchronous>, transform_indices = @transform_3, window_bounds = array<i64: 1, 128>}, {pipeline_mode = #tpu.pipeline_mode<synchronous>, transform_indices = @transform_4, window_bounds = array<i64: 128, 128>}, {pipeline_mode = #tpu.pipeline_mode<synchronous>, transform_indices = @transform_5, window_bounds = array<i64: 1, 128>}, {transform_indices = @transform_6, window_bounds = array<i64: 1, 8, 16, 128>}]} {
    %c8_i32 = arith.constant 8 : i32
    %0 = arith.muli %arg1, %c8_i32 : i32
    %c0 = arith.constant 0 : index
    %1 = arith.index_cast %0 : i32 to index
    %c0_0 = arith.constant 0 : index
    %c0_1 = arith.constant 0 : index
    %2 = vector.load %arg2[%c0, %1, %c0_0, %c0_1] : memref<1x18x32x128xbf16, #tpu.memory_space<vmem>>, vector<1x10x32x128xbf16>
    %3 = vector.shape_cast %2 : vector<1x10x32x128xbf16> to vector<10x32x128xbf16>
    %4 = vector.shape_cast %3 : vector<10x32x128xbf16> to vector<320x128xbf16>
    %c0_2 = arith.constant 0 : index
    %c0_3 = arith.constant 0 : index
    %5 = vector.load %arg3[%c0_2, %c0_3] : memref<128x128xbf16, #tpu.memory_space<vmem>>, vector<128x128xbf16>
    %cst = arith.constant dense<0.000000e+00> : vector<320x128xf32>
    %6 = tpu.matmul %4, %5, %cst {dimension_numbers = #tpu.dot_dimension_numbers<[1], [0], [0], [1], [0, 0, 1, 1], [], []>} : vector<320x128xbf16>, vector<128x128xbf16>, vector<320x128xf32> -> vector<320x128xf32>
    %cst_4 = arith.constant 0.000000e+00 : f32
    %7 = vector.broadcast %cst_4 : f32 to vector<320x128xf32>
    %8 = arith.maximumf %6, %7 : vector<320x128xf32>
    %9 = vector.shape_cast %8 : vector<320x128xf32> to vector<10x32x128xf32>
    %c0_5 = arith.constant 0 : index
    %c0_6 = arith.constant 0 : index
    %c0_7 = arith.constant 0 : index
    %10 = vector.load %arg9[%c0_5, %c0_6, %c0_7] : memref<10x32x128xf32, #tpu.memory_space<vmem>>, vector<10x32x128xf32>
    tpu.vector_store %arg9[%c0_5, %c0_6, %c0_7], %9 {strides = array<i32>} : memref<10x32x128xf32, #tpu.memory_space<vmem>>, vector<10x32x128xf32>,
    %c0_8 = arith.constant 0 : index
    %c0_9 = arith.constant 0 : index
    %11 = vector.load %arg4[%c0_8, %c0_9] : memref<9x128xf32, #tpu.memory_space<vmem>>, vector<9x128xf32>
    %cst_10 = arith.constant 0.000000e+00 : f32
    %12 = vector.broadcast %cst_10 : f32 to vector<8x16x128xf32>
    %c0_11 = arith.constant 0 : index
    %c0_12 = arith.constant 0 : index
    %c0_13 = arith.constant 0 : index
    %13 = vector.load %arg9[%c0_11, %c0_12, %c0_13] : memref<10x32x128xf32, #tpu.memory_space<vmem>>, vector<8x16x128xf32>
    %14 = vector.extract_strided_slice %11 {offsets = [0, 0], sizes = [1, 128], strides = [1, 1]} : vector<9x128xf32> to vector<1x128xf32>
    %15 = vector.shape_cast %14 : vector<1x128xf32> to vector<1x1x128xf32>
    %16 = vector.broadcast %15 : vector<1x1x128xf32> to vector<8x16x128xf32>
    %17 = arith.mulf %13, %16 : vector<8x16x128xf32>
    %18 = arith.addf %12, %17 : vector<8x16x128xf32>
    %c0_14 = arith.constant 0 : index
    %c1 = arith.constant 1 : index
    %c0_15 = arith.constant 0 : index
    %19 = vector.load %arg9[%c0_14, %c1, %c0_15] : memref<10x32x128xf32, #tpu.memory_space<vmem>>, vector<8x16x128xf32>
    %20 = vector.extract_strided_slice %11 {offsets = [1, 0], sizes = [1, 128], strides = [1, 1]} : vector<9x128xf32> to vector<1x128xf32>
    %21 = vector.shape_cast %20 : vector<1x128xf32> to vector<1x1x128xf32>
    %22 = vector.broadcast %21 : vector<1x1x128xf32> to vector<8x16x128xf32>
    %23 = arith.mulf %19, %22 : vector<8x16x128xf32>
    %24 = arith.addf %18, %23 : vector<8x16x128xf32>
    %c0_16 = arith.constant 0 : index
    %c2 = arith.constant 2 : index
    %c0_17 = arith.constant 0 : index
    %25 = vector.load %arg9[%c0_16, %c2, %c0_17] : memref<10x32x128xf32, #tpu.memory_space<vmem>>, vector<8x16x128xf32>
    %26 = vector.extract_strided_slice %11 {offsets = [2, 0], sizes = [1, 128], strides = [1, 1]} : vector<9x128xf32> to vector<1x128xf32>
    %27 = vector.shape_cast %26 : vector<1x128xf32> to vector<1x1x128xf32>
    %28 = vector.broadcast %27 : vector<1x1x128xf32> to vector<8x16x128xf32>
    %29 = arith.mulf %25, %28 : vector<8x16x128xf32>
    %30 = arith.addf %24, %29 : vector<8x16x128xf32>
    %c1_18 = arith.constant 1 : index
    %c0_19 = arith.constant 0 : index
    %c0_20 = arith.constant 0 : index
    %31 = vector.load %arg9[%c1_18, %c0_19, %c0_20] : memref<10x32x128xf32, #tpu.memory_space<vmem>>, vector<8x16x128xf32>
    %32 = vector.extract_strided_slice %11 {offsets = [3, 0], sizes = [1, 128], strides = [1, 1]} : vector<9x128xf32> to vector<1x128xf32>
    %33 = vector.shape_cast %32 : vector<1x128xf32> to vector<1x1x128xf32>
    %34 = vector.broadcast %33 : vector<1x1x128xf32> to vector<8x16x128xf32>
    %35 = arith.mulf %31, %34 : vector<8x16x128xf32>
    %36 = arith.addf %30, %35 : vector<8x16x128xf32>
    %c1_21 = arith.constant 1 : index
    %c1_22 = arith.constant 1 : index
    %c0_23 = arith.constant 0 : index
    %37 = vector.load %arg9[%c1_21, %c1_22, %c0_23] : memref<10x32x128xf32, #tpu.memory_space<vmem>>, vector<8x16x128xf32>
    %38 = vector.extract_strided_slice %11 {offsets = [4, 0], sizes = [1, 128], strides = [1, 1]} : vector<9x128xf32> to vector<1x128xf32>
    %39 = vector.shape_cast %38 : vector<1x128xf32> to vector<1x1x128xf32>
    %40 = vector.broadcast %39 : vector<1x1x128xf32> to vector<8x16x128xf32>
    %41 = arith.mulf %37, %40 : vector<8x16x128xf32>
    %42 = arith.addf %36, %41 : vector<8x16x128xf32>
    %c1_24 = arith.constant 1 : index
    %c2_25 = arith.constant 2 : index
    %c0_26 = arith.constant 0 : index
    %43 = vector.load %arg9[%c1_24, %c2_25, %c0_26] : memref<10x32x128xf32, #tpu.memory_space<vmem>>, vector<8x16x128xf32>
    %44 = vector.extract_strided_slice %11 {offsets = [5, 0], sizes = [1, 128], strides = [1, 1]} : vector<9x128xf32> to vector<1x128xf32>
    %45 = vector.shape_cast %44 : vector<1x128xf32> to vector<1x1x128xf32>
    %46 = vector.broadcast %45 : vector<1x1x128xf32> to vector<8x16x128xf32>
    %47 = arith.mulf %43, %46 : vector<8x16x128xf32>
    %48 = arith.addf %42, %47 : vector<8x16x128xf32>
    %c2_27 = arith.constant 2 : index
    %c0_28 = arith.constant 0 : index
    %c0_29 = arith.constant 0 : index
    %49 = vector.load %arg9[%c2_27, %c0_28, %c0_29] : memref<10x32x128xf32, #tpu.memory_space<vmem>>, vector<8x16x128xf32>
    %50 = vector.extract_strided_slice %11 {offsets = [6, 0], sizes = [1, 128], strides = [1, 1]} : vector<9x128xf32> to vector<1x128xf32>
    %51 = vector.shape_cast %50 : vector<1x128xf32> to vector<1x1x128xf32>
    %52 = vector.broadcast %51 : vector<1x1x128xf32> to vector<8x16x128xf32>
    %53 = arith.mulf %49, %52 : vector<8x16x128xf32>
    %54 = arith.addf %48, %53 : vector<8x16x128xf32>
    %c2_30 = arith.constant 2 : index
    %c1_31 = arith.constant 1 : index
    %c0_32 = arith.constant 0 : index
    %55 = vector.load %arg9[%c2_30, %c1_31, %c0_32] : memref<10x32x128xf32, #tpu.memory_space<vmem>>, vector<8x16x128xf32>
    %56 = vector.extract_strided_slice %11 {offsets = [7, 0], sizes = [1, 128], strides = [1, 1]} : vector<9x128xf32> to vector<1x128xf32>
    %57 = vector.shape_cast %56 : vector<1x128xf32> to vector<1x1x128xf32>
    %58 = vector.broadcast %57 : vector<1x1x128xf32> to vector<8x16x128xf32>
    %59 = arith.mulf %55, %58 : vector<8x16x128xf32>
    %60 = arith.addf %54, %59 : vector<8x16x128xf32>
    %c2_33 = arith.constant 2 : index
    %c2_34 = arith.constant 2 : index
    %c0_35 = arith.constant 0 : index
    %61 = vector.load %arg9[%c2_33, %c2_34, %c0_35] : memref<10x32x128xf32, #tpu.memory_space<vmem>>, vector<8x16x128xf32>
    %62 = vector.extract_strided_slice %11 {offsets = [8, 0], sizes = [1, 128], strides = [1, 1]} : vector<9x128xf32> to vector<1x128xf32>
    %63 = vector.shape_cast %62 : vector<1x128xf32> to vector<1x1x128xf32>
    %64 = vector.broadcast %63 : vector<1x1x128xf32> to vector<8x16x128xf32>
    %65 = arith.mulf %61, %64 : vector<8x16x128xf32>
    %66 = arith.addf %60, %65 : vector<8x16x128xf32>
    %c0_36 = arith.constant 0 : index
    %c0_37 = arith.constant 0 : index
    %67 = vector.load %arg5[%c0_36, %c0_37] : memref<1x128xf32, #tpu.memory_space<vmem>>, vector<1x128xf32>
    %68 = vector.shape_cast %67 : vector<1x128xf32> to vector<1x1x128xf32>
    %69 = vector.broadcast %68 : vector<1x1x128xf32> to vector<8x16x128xf32>
    %70 = arith.addf %66, %69 : vector<8x16x128xf32>
    %cst_38 = arith.constant 0.000000e+00 : f32
    %71 = vector.broadcast %cst_38 : f32 to vector<8x16x128xf32>
    %72 = arith.maximumf %70, %71 : vector<8x16x128xf32>
    %73 = vector.shape_cast %72 : vector<8x16x128xf32> to vector<128x128xf32>
    %74 = arith.truncf %73 : vector<128x128xf32> to vector<128x128xbf16>
    %c0_39 = arith.constant 0 : index
    %c0_40 = arith.constant 0 : index
    %75 = vector.load %arg6[%c0_39, %c0_40] : memref<128x128xbf16, #tpu.memory_space<vmem>>, vector<128x128xbf16>
    %cst_41 = arith.constant dense<0.000000e+00> : vector<128x128xf32>
    %76 = tpu.matmul %74, %75, %cst_41 {dimension_numbers = #tpu.dot_dimension_numbers<[1], [0], [0], [1], [0, 0, 1, 1], [], []>} : vector<128x128xbf16>, vector<128x128xbf16>, vector<128x128xf32> -> vector<128x128xf32>
    %c0_42 = arith.constant 0 : index
    %c0_43 = arith.constant 0 : index
    %77 = vector.load %arg7[%c0_42, %c0_43] : memref<1x128xf32, #tpu.memory_space<vmem>>, vector<1x128xf32>
    %78 = vector.broadcast %77 : vector<1x128xf32> to vector<128x128xf32>
    %79 = arith.addf %76, %78 : vector<128x128xf32>
    %80 = vector.shape_cast %79 : vector<128x128xf32> to vector<8x16x128xf32>
    %c1_i32 = arith.constant 1 : i32
    %81 = arith.addi %0, %c1_i32 : i32
    %c0_44 = arith.constant 0 : index
    %82 = arith.index_cast %81 : i32 to index
    %c1_45 = arith.constant 1 : index
    %c0_46 = arith.constant 0 : index
    %83 = vector.load %arg2[%c0_44, %82, %c1_45, %c0_46] : memref<1x18x32x128xbf16, #tpu.memory_space<vmem>>, vector<1x8x16x128xbf16>
    %84 = vector.shape_cast %83 : vector<1x8x16x128xbf16> to vector<8x16x128xbf16>
    %85 = arith.extf %84 : vector<8x16x128xbf16> to vector<8x16x128xf32>
    %86 = arith.addf %80, %85 : vector<8x16x128xf32>
    %87 = arith.truncf %86 : vector<8x16x128xf32> to vector<8x16x128xbf16>
    %c0_47 = arith.constant 0 : index
    %c0_48 = arith.constant 0 : index
    %c0_49 = arith.constant 0 : index
    %c0_50 = arith.constant 0 : index
    %88 = vector.load %arg8[%c0_47, %c0_48, %c0_49, %c0_50] : memref<1x8x16x128xbf16, #tpu.memory_space<vmem>>, vector<1x8x16x128xbf16>
    %89 = vector.shape_cast %88 : vector<1x8x16x128xbf16> to vector<8x16x128xbf16>
    %90 = vector.shape_cast %87 : vector<8x16x128xbf16> to vector<1x8x16x128xbf16>
    tpu.vector_store %arg8[%c0_47, %c0_48, %c0_49, %c0_50], %90 {strides = array<i32>} : memref<1x8x16x128xbf16, #tpu.memory_space<vmem>>, vector<1x8x16x128xbf16>,
    return
  }
  func.func @transform_0(%arg0: i32, %arg1: i32) -> (i32, i32, i32, i32) {
    %c0_i32 = arith.constant 0 : i32
    %c0_i32_0 = arith.constant 0 : i32
    %c0_i32_1 = arith.constant 0 : i32
    %c0_i32_2 = arith.constant 0 : i32
    return %arg0, %c0_i32, %c0_i32_0, %c0_i32_1 : i32, i32, i32, i32
  }
  func.func @transform_1(%arg0: i32, %arg1: i32) -> (i32, i32) {
    %c0_i32 = arith.constant 0 : i32
    %c0_i32_0 = arith.constant 0 : i32
    %c0_i32_1 = arith.constant 0 : i32
    return %c0_i32, %c0_i32_0 : i32, i32
  }
  func.func @transform_2(%arg0: i32, %arg1: i32) -> (i32, i32) {
    %c0_i32 = arith.constant 0 : i32
    %c0_i32_0 = arith.constant 0 : i32
    %c0_i32_1 = arith.constant 0 : i32
    return %c0_i32, %c0_i32_0 : i32, i32
  }
  func.func @transform_3(%arg0: i32, %arg1: i32) -> (i32, i32) {
    %c0_i32 = arith.constant 0 : i32
    %c0_i32_0 = arith.constant 0 : i32
    %c0_i32_1 = arith.constant 0 : i32
    return %c0_i32, %c0_i32_0 : i32, i32
  }
  func.func @transform_4(%arg0: i32, %arg1: i32) -> (i32, i32) {
    %c0_i32 = arith.constant 0 : i32
    %c0_i32_0 = arith.constant 0 : i32
    %c0_i32_1 = arith.constant 0 : i32
    return %c0_i32, %c0_i32_0 : i32, i32
  }
  func.func @transform_5(%arg0: i32, %arg1: i32) -> (i32, i32) {
    %c0_i32 = arith.constant 0 : i32
    %c0_i32_0 = arith.constant 0 : i32
    %c0_i32_1 = arith.constant 0 : i32
    return %c0_i32, %c0_i32_0 : i32, i32
  }
  func.func @transform_6(%arg0: i32, %arg1: i32) -> (i32, i32, i32, i32) {
    %c0_i32 = arith.constant 0 : i32
    %c0_i32_0 = arith.constant 0 : i32
    %c0_i32_1 = arith.constant 0 : i32
    return %arg0, %arg1, %c0_i32, %c0_i32_0 : i32, i32, i32, i32
  }
}

</mosaic_0001>

<llo_original>
// kernel: tpu_custom_call.1
$region0: #{tpu_custom_call.1}
  #allocation0 [shape = 'u32[]', space=smem, size = 0x4, offset = 0x4, fixed_abs, tag = 'smem constant byte address 0x4 - core index']
  #allocation1 [shape = 'u32[144,128]{1,0:T(1,128)}', space=vmem, size = 0x12000, scoped, tag = 'internal scratch']
  #allocation2 [shape = 'f32[10,32,128]{2,1,0:T(8,128)}', space=vmem, size = 0x28000, scoped, tag = 'scratch operand']
  %s0 = inlined_call_operand.hbm [shape: bf16[2,18,32,128], index: 0, kind: input, shape index: {}]
  %s1 = inlined_call_operand.hbm [shape: bf16[128,128], index: 1, kind: input, shape index: {}]
  %s2 = inlined_call_operand.hbm [shape: f32[9,128], index: 2, kind: input, shape index: {}]
  %s3 = inlined_call_operand.vmem [shape: f32[1,128], index: 3, kind: input, shape index: {}]
  %s4 = inlined_call_operand.hbm [shape: bf16[128,128], index: 4, kind: input, shape index: {}]
  %s5 = inlined_call_operand.vmem [shape: f32[1,128], index: 5, kind: input, shape index: {}]
  %s6 = inlined_call_operand.hbm [shape: bf16[2,16,16,128], index: 6, kind: output, shape index: {}]
  %s7 = sld [smem:[#allocation0]]
  $region73: #{tpu_custom_call.1} parent=0
    _
  %s9 = ssub.s32 1, %s7
  %s10 = scalar_select 0, %s9, %s7
  $region1: #{tpu_custom_call.1} parent=0
    #allocation3 [shape = 'u8[294912]{0}', space=vmem, size = 0x48000, scoped, tag = 'input window, operand 0']
    #allocation4 [shape = 's32[2]{0}', space=sflag, size = 0x8, scoped, tag = 'scoped memory for tpu_custom_call.1']
    #allocation5 [shape = 's32[2]{0}', space=sflag, size = 0x8, scoped, tag = 'scoped memory for tpu_custom_call.1']
    #allocation6 [shape = 'u8[32768]{0}', space=vmem, size = 0x8000, scoped, tag = 'input window, operand 1, single buffered']
    #allocation7 [shape = 's32[1]{0}', space=sflag, size = 0x4, scoped, tag = 'scoped memory for tpu_custom_call.1']
    #allocation8 [shape = 'u8[8192]{0}', space=vmem, size = 0x2000, scoped, tag = 'input window, operand 2, single buffered']
    #allocation9 [shape = 'u8[32768]{0}', space=vmem, size = 0x8000, scoped, tag = 'input window, operand 4, single buffered']
    #allocation10 [shape = 's32[1]{0}', space=sflag, size = 0x4, scoped, tag = 'scoped memory for tpu_custom_call.1']
    #allocation11 [shape = 'u8[65536]{0}', space=vmem, size = 0x10000, scoped, tag = 'output window, operand 0']
    %11 = vsyncpa [#allocation4], 0
    %s12 = scalar_lea.sflag [#allocation4], 1
    %13 = vsyncpa %s12, 0
    %14 = vsyncpa [#allocation7], 0
    %15 = vsyncpa [#allocation10], 0
    %16 = vsyncpa [#allocation5], 0
    %s17 = scalar_lea.sflag [#allocation5], 1
    %18 = vsyncpa %s17, 0
    loop: start=0, step=1, limit=6
    $region2: #{tpu_custom_call.1} parent=1 // loop_pre_header
      _
    $region3: #{tpu_custom_call.1} parent=1 // loop_header
      %s20 = sphi 0, %s24
      %p21 = scmp.ge.s32.totalorder %s20, 6
      %s27 = sphi 0, %s39
      %s28 = sphi 0, %s35
      %s29 = sphi 0, %s27
      %s30 = sphi 0, %s28
      %s31 = sphi 0, %s29
      %s32 = sphi 0, %s30
      %s42 = sphi 0, %s44
      %s45 = sphi 0, %s42
      %s46 = sphi 0, %s45
      %s62 = sphi 0, %s46
      %s66 = sphi 0, %s66
      %s68 = sphi 0, %s66
      %s69 = sphi 0, %s68
      %s83 = sphi 0, %s69
      %s87 = sphi 0, %s87
      %s89 = sphi 0, %s87
      %s90 = sphi 0, %s89
      %s104 = sphi 0, %s90
      %s108 = sphi 0, %s108
      %s110 = sphi 0, %s108
      %s111 = sphi 0, %s110
      %s125 = sphi 0, %s111
      %s129 = sphi 0, %s129
      %s131 = sphi 0, %s129
      %s132 = sphi 0, %s131
      %s146 = sphi 0, %s132
      %s150 = sphi 0, %s150
      %s152 = sphi 0, %s150
      %s153 = sphi 0, %s152
      %s167 = sphi 0, %s153
      %s175 = sphi 0, %s177
      %s178 = sphi 0, %s175
      %s179 = sphi 0, %s178
      %s195 = sphi 0, %s179
    $region4: #{tpu_custom_call.1} parent=1 // loop_header_branch
      %23 = sbr.rel (%p21) target = $region8
    $region5: #{tpu_custom_call.1} parent=1 // loop_body
      %s25 = ssub.s32 %s20, 1
      %s26 = ssub.s32 %s20, 2
      %s33 = sadd.s32 1, %s28
      %p34 = scmp.ge.s32.totalorder %s33, 2
      %s35 = scalar_select %p34, 0, %s33
      %s36 = sadd.s32 1, %s27
      %s37 = scalar_select %p34, %s36, %s27
      %p38 = scmp.ge.s32.totalorder %s37, 2
      %s39 = scalar_select %p38, 0, %s37
      %s40 = ssub.s32 %s27, %s39
      %p41 = scmp.eq.s32.totalorder %s40, 0
      %s43 = sadd.s32 %s42, 1
      %s44 = scalar_select %p41, %s42, %s43
      %p47 = pneg %p41
      %p48 = scmp.eq.s32.totalorder %s20, 3
      %p49 = por %p47, %p48
      %p50 = scmp.ne.s32.totalorder %s42, %s45
      %p51 = scmp.eq.s32.totalorder %s20, 0
      %p52 = por %p50, %p51
      %p53 = scmp.ne.s32.totalorder %s42, %s45
      %p54 = scmp.eq.s32.totalorder %s25, 3
      %p55 = por %p53, %p54
      %p56 = scmp.ne.s32.totalorder %s45, %s46
      %p57 = scmp.eq.s32.totalorder %s25, 0
      %p58 = por %p56, %p57
      %p59 = scmp.ne.s32.totalorder %s45, %s46
      %p60 = scmp.eq.s32.totalorder %s26, 3
      %p61 = por %p59, %p60
      %p63 = scmp.ne.s32.totalorder %s46, %s62
      %p64 = scmp.eq.s32.totalorder %s26, 0
      %p65 = por %p63, %p64
      %s67 = sadd.s32 %s66, 1
      %p70 = scmp.eq.s32.totalorder %s20, 3
      %p71 = scmp.ne.s32.totalorder %s66, %s68
      %p72 = scmp.eq.s32.totalorder %s20, 0
      %p73 = por %p71, %p72
      %p74 = scmp.ne.s32.totalorder %s66, %s68
      %p75 = scmp.eq.s32.totalorder %s25, 3
      %p76 = por %p74, %p75
      %p77 = scmp.ne.s32.totalorder %s68, %s69
      %p78 = scmp.eq.s32.totalorder %s25, 0
      %p79 = por %p77, %p78
      %p80 = scmp.ne.s32.totalorder %s68, %s69
      %p81 = scmp.eq.s32.totalorder %s26, 3
      %p82 = por %p80, %p81
      %p84 = scmp.ne.s32.totalorder %s69, %s83
      %p85 = scmp.eq.s32.totalorder %s26, 0
      %p86 = por %p84, %p85
      %s88 = sadd.s32 %s87, 1
      %p91 = scmp.eq.s32.totalorder %s20, 3
      %p92 = scmp.ne.s32.totalorder %s87, %s89
      %p93 = scmp.eq.s32.totalorder %s20, 0
      %p94 = por %p92, %p93
      %p95 = scmp.ne.s32.totalorder %s87, %s89
      %p96 = scmp.eq.s32.totalorder %s25, 3
      %p97 = por %p95, %p96
      %p98 = scmp.ne.s32.totalorder %s89, %s90
      %p99 = scmp.eq.s32.totalorder %s25, 0
      %p100 = por %p98, %p99
      %p101 = scmp.ne.s32.totalorder %s89, %s90
      %p102 = scmp.eq.s32.totalorder %s26, 3
      %p103 = por %p101, %p102
      %p105 = scmp.ne.s32.totalorder %s90, %s104
      %p106 = scmp.eq.s32.totalorder %s26, 0
      %p107 = por %p105, %p106
      %s109 = sadd.s32 %s108, 1
      %p112 = scmp.eq.s32.totalorder %s20, 3
      %p113 = scmp.ne.s32.totalorder %s108, %s110
      %p114 = scmp.eq.s32.totalorder %s20, 0
      %p115 = por %p113, %p114
      %p116 = scmp.ne.s32.totalorder %s108, %s110
      %p117 = scmp.eq.s32.totalorder %s25, 3
      %p118 = por %p116, %p117
      %p119 = scmp.ne.s32.totalorder %s110, %s111
      %p120 = scmp.eq.s32.totalorder %s25, 0
      %p121 = por %p119, %p120
      %p122 = scmp.ne.s32.totalorder %s110, %s111
      %p123 = scmp.eq.s32.totalorder %s26, 3
      %p124 = por %p122, %p123
      %p126 = scmp.ne.s32.totalorder %s111, %s125
      %p127 = scmp.eq.s32.totalorder %s26, 0
      %p128 = por %p126, %p127
      %s130 = sadd.s32 %s129, 1
      %p133 = scmp.eq.s32.totalorder %s20, 3
      %p134 = scmp.ne.s32.totalorder %s129, %s131
      %p135 = scmp.eq.s32.totalorder %s20, 0
      %p136 = por %p134, %p135
      %p137 = scmp.ne.s32.totalorder %s129, %s131
      %p138 = scmp.eq.s32.totalorder %s25, 3
      %p139 = por %p137, %p138
      %p140 = scmp.ne.s32.totalorder %s131, %s132
      %p141 = scmp.eq.s32.totalorder %s25, 0
      %p142 = por %p140, %p141
      %p143 = scmp.ne.s32.totalorder %s131, %s132
      %p144 = scmp.eq.s32.totalorder %s26, 3
      %p145 = por %p143, %p144
      %p147 = scmp.ne.s32.totalorder %s132, %s146
      %p148 = scmp.eq.s32.totalorder %s26, 0
      %p149 = por %p147, %p148
      %s151 = sadd.s32 %s150, 1
      %p154 = scmp.eq.s32.totalorder %s20, 3
      %p155 = scmp.ne.s32.totalorder %s150, %s152
      %p156 = scmp.eq.s32.totalorder %s20, 0
      %p157 = por %p155, %p156
      %p158 = scmp.ne.s32.totalorder %s150, %s152
      %p159 = scmp.eq.s32.totalorder %s25, 3
      %p160 = por %p158, %p159
      %p161 = scmp.ne.s32.totalorder %s152, %s153
      %p162 = scmp.eq.s32.totalorder %s25, 0
      %p163 = por %p161, %p162
      %p164 = scmp.ne.s32.totalorder %s152, %s153
      %p165 = scmp.eq.s32.totalorder %s26, 3
      %p166 = por %p164, %p165
      %p168 = scmp.ne.s32.totalorder %s153, %s167
      %p169 = scmp.eq.s32.totalorder %s26, 0
      %p170 = por %p168, %p169
      %s171 = ssub.s32 %s27, %s39
      %s172 = ssub.s32 %s28, %s35
      %s173 = sor.u32 %s171, %s172
      %p174 = scmp.eq.s32.totalorder %s173, 0
      %s176 = sadd.s32 %s175, 1
      %s177 = scalar_select %p174, %s175, %s176
      %p180 = pneg %p174
      %p181 = scmp.eq.s32.totalorder %s20, 3
      %p182 = por %p180, %p181
      %p183 = scmp.ne.s32.totalorder %s175, %s178
      %p184 = scmp.eq.s32.totalorder %s20, 0
      %p185 = por %p183, %p184
      %p186 = scmp.ne.s32.totalorder %s175, %s178
      %p187 = scmp.eq.s32.totalorder %s25, 3
      %p188 = por %p186, %p187
      %p189 = scmp.ne.s32.totalorder %s178, %s179
      %p190 = scmp.eq.s32.totalorder %s25, 0
      %p191 = por %p189, %p190
      %p192 = scmp.ne.s32.totalorder %s178, %s179
      %p193 = scmp.eq.s32.totalorder %s26, 3
      %p194 = por %p192, %p193
      %p196 = scmp.ne.s32.totalorder %s179, %s195
      %p197 = scmp.eq.s32.totalorder %s26, 0
      %p198 = por %p196, %p197
      %p199 = scmp.le.s32.totalorder 1, %s20
      %p200 = scmp.lt.s32.totalorder %s20, 5
      %p201 = pnand %p199, %p200
      %p202 = pneg %p201
      // Predicated region
      $region9: #{tpu_custom_call.1} parent=5 // pred_check
        _
      $region10: #{tpu_custom_call.1} parent=5 // pred_check_branch
        %204 = sbr.rel (%p201) target = $region12
      $region11: #{tpu_custom_call.1} parent=5 // pred_region
        %s205 = ssub.s32 %s20, 1
        // Predicated region
        $region13: #{tpu_custom_call.1} parent=11 // pred_check
          %p206 = pneg %p79
        $region14: #{tpu_custom_call.1} parent=11 // pred_check_branch
          %208 = sbr.rel (%p206) target = $region16
        $region15: #{tpu_custom_call.1} parent=11 // pred_region
          %s210 = ssub.s32 1024, 1024
          %211 = vsyncadd [#allocation7], %s210
          %s212 = sshll.u32 [#allocation6], 4
          %s213 = int_to_ptr.vmem [resolvable:$true] %s212
          %218 = dma.hbm_to_vmem [thread:$0]  %s1, 1024, %s213, [#allocation7], 64, 64, 4
        $region16: #{tpu_custom_call.1} parent=11 // pred_fallthru
          _
        // Predicated region
        $region17: #{tpu_custom_call.1} parent=11 // pred_check
          %p219 = pneg %p100
        $region18: #{tpu_custom_call.1} parent=11 // pred_check_branch
          %221 = sbr.rel (%p219) target = $region20
        $region19: #{tpu_custom_call.1} parent=11 // pred_region
          %s223 = ssub.s32 256, 256
          %224 = vsyncadd [#allocation7], %s223
          %s225 = sshll.u32 [#allocation8], 4
          %s226 = int_to_ptr.vmem [resolvable:$true] %s225
          %231 = dma.hbm_to_vmem [thread:$0]  %s2, 256, %s226, [#allocation7], 128, 128, 8
        $region20: #{tpu_custom_call.1} parent=11 // pred_fallthru
          _
        // Predicated region
        $region21: #{tpu_custom_call.1} parent=11 // pred_check
          %p232 = pneg %p121
        $region22: #{tpu_custom_call.1} parent=11 // pred_check_branch
          %234 = sbr.rel (%p232) target = $region24
        $region23: #{tpu_custom_call.1} parent=11 // pred_region
          _
        $region24: #{tpu_custom_call.1} parent=11 // pred_fallthru
          _
        // Predicated region
        $region25: #{tpu_custom_call.1} parent=11 // pred_check
          %p235 = pneg %p142
        $region26: #{tpu_custom_call.1} parent=11 // pred_check_branch
          %237 = sbr.rel (%p235) target = $region28
        $region27: #{tpu_custom_call.1} parent=11 // pred_region
          %s239 = ssub.s32 1024, 1024
          %240 = vsyncadd [#allocation10], %s239
          %s241 = sshll.u32 [#allocation9], 4
          %s242 = int_to_ptr.vmem [resolvable:$true] %s241
          %247 = dma.hbm_to_vmem [thread:$0]  %s4, 1024, %s242, [#allocation10], 64, 64, 4
        $region28: #{tpu_custom_call.1} parent=11 // pred_fallthru
          _
        // Predicated region
        $region29: #{tpu_custom_call.1} parent=11 // pred_check
          %p248 = pneg %p163
        $region30: #{tpu_custom_call.1} parent=11 // pred_check_branch
          %250 = sbr.rel (%p248) target = $region32
        $region31: #{tpu_custom_call.1} parent=11 // pred_region
          _
        $region32: #{tpu_custom_call.1} parent=11 // pred_fallthru
          _
      $region12: #{tpu_custom_call.1} parent=5 // pred_fallthru
        _
      %p251 = scmp.lt.s32.totalorder %s20, 4
      // Predicated region
      $region33: #{tpu_custom_call.1} parent=5 // pred_check
        %p252 = pneg %p251
      $region34: #{tpu_custom_call.1} parent=5 // pred_check_branch
        %254 = sbr.rel (%p252) target = $region36
      $region35: #{tpu_custom_call.1} parent=5 // pred_region
        // Predicated region
        $region37: #{tpu_custom_call.1} parent=35 // pred_check
          %p255 = pneg %p52
        $region38: #{tpu_custom_call.1} parent=35 // pred_check_branch
          %257 = sbr.rel (%p255) target = $region40
        $region39: #{tpu_custom_call.1} parent=35 // pred_region
          %s258 = sand.u32 %s42, 1
          %s259 = scalar_lea.sflag [#allocation4], %s258
          %s260 = sand.u32 %s42, 1
          %s261 = smul.addr %s260, 288
          %s262 = scalar_lea.vmem [#allocation3], %s261
          %s264 = ssub.s32 4608, 4608
          %265 = vsyncadd %s259, %s264
          %s266 = smul.addr %s27, 72
          %s267 = smul.addr %s266, 64
          %s268 = scalar_lea.hbm %s0, %s267
          %s269 = sshll.u32 %s262, 4
          %s270 = int_to_ptr.vmem [resolvable:$true] %s269
          %275 = dma.hbm_to_vmem [thread:$0]  %s268, 4608, %s270, %s259, 64, 64, 4
        $region40: #{tpu_custom_call.1} parent=35 // pred_fallthru
          _
      $region36: #{tpu_custom_call.1} parent=5 // pred_fallthru
        _
      %p276 = scmp.le.s32.totalorder 1, %s20
      %p277 = scmp.lt.s32.totalorder %s20, 5
      %p278 = pnand %p276, %p277
      %p279 = pneg %p278
      // Predicated region
      $region41: #{tpu_custom_call.1} parent=5 // pred_check
        _
      $region42: #{tpu_custom_call.1} parent=5 // pred_check_branch
        %281 = sbr.rel (%p278) target = $region44
      $region43: #{tpu_custom_call.1} parent=5 // pred_region
        %s282 = ssub.s32 %s20, 1
        %s283 = sand.u32 %s45, 1
        %s284 = scalar_lea.sflag [#allocation4], %s283
        %s285 = sand.u32 %s45, 1
        %s286 = smul.addr %s285, 288
        %s287 = scalar_lea.vmem [#allocation3], %s286
        // Predicated region
        $region45: #{tpu_custom_call.1} parent=43 // pred_check
          %p288 = pneg %p58
        $region46: #{tpu_custom_call.1} parent=43 // pred_check_branch
          %290 = sbr.rel (%p288) target = $region48
        $region47: #{tpu_custom_call.1} parent=43 // pred_region
          %291 = dma.done %s284, 4608
        $region48: #{tpu_custom_call.1} parent=43 // pred_fallthru
          _
        // Predicated region
        $region49: #{tpu_custom_call.1} parent=43 // pred_check
          %p292 = pneg %p79
        $region50: #{tpu_custom_call.1} parent=43 // pred_check_branch
          %294 = sbr.rel (%p292) target = $region52
        $region51: #{tpu_custom_call.1} parent=43 // pred_region
          %295 = dma.done [#allocation7], 1024
        $region52: #{tpu_custom_call.1} parent=43 // pred_fallthru
          _
        // Predicated region
        $region53: #{tpu_custom_call.1} parent=43 // pred_check
          %p296 = pneg %p100
        $region54: #{tpu_custom_call.1} parent=43 // pred_check_branch
          %298 = sbr.rel (%p296) target = $region56
        $region55: #{tpu_custom_call.1} parent=43 // pred_region
          %299 = dma.done [#allocation7], 256
        $region56: #{tpu_custom_call.1} parent=43 // pred_fallthru
          _
        // Predicated region
        $region57: #{tpu_custom_call.1} parent=43 // pred_check
          %p300 = pneg %p142
        $region58: #{tpu_custom_call.1} parent=43 // pred_check_branch
          %302 = sbr.rel (%p300) target = $region60
        $region59: #{tpu_custom_call.1} parent=43 // pred_region
          %303 = dma.done [#allocation10], 1024
        $region60: #{tpu_custom_call.1} parent=43 // pred_fallthru
          _
        %s304 = sand.u32 %s45, 1
        %s305 = scalar_lea.sflag [#allocation4], %s304
        %s306 = sand.u32 %s45, 1
        %s307 = smul.addr %s306, 288
        %s308 = scalar_lea.vmem [#allocation3], %s307
        %p309 = pneg %p58
        %p310 = pneg %p55
        %p311 = pneg %p79
        %p312 = pneg %p76
        %p313 = pneg %p100
        %p314 = pneg %p97
        %p315 = pneg %p121
        %p316 = pneg %p118
        %p317 = pneg %p142
        %p318 = pneg %p139
        %p319 = pneg %p163
        %p320 = pneg %p160
        %p321 = pneg %p191
        %p322 = pneg %p188
        %s323 = sand.u32 %s178, 1
        %s324 = scalar_lea.sflag [#allocation5], %s323
        %s325 = sand.u32 %s178, 1
        %s326 = smul.addr %s325, 64
        %s327 = scalar_lea.vmem [#allocation11], %s326
        %s328 = smul.u32 8, %s30
        %s330 = smul.u32 %s30, 8
        %s331 = smul.u32 %s330, 4
        %s332 = smul.addr %s331, 4
        %s333 = scalar_lea.vmem %s287, %s332 [#allocation3]
        %v334 = vld [vmem:[%s333] sm:$0xf]
        %v335 = vld [vmem:[%s333 + $0x4] sm:$0xf]
        %v336 = vld [vmem:[%s333 + $0x8] sm:$0xf]
        %v337 = vld [vmem:[%s333 + $0xc] sm:$0xf]
        %v338 = vld [vmem:[%s333 + $0x10] sm:$0xf]
        %v339 = vld [vmem:[%s333 + $0x14] sm:$0xf]
        %v340 = vld [vmem:[%s333 + $0x18] sm:$0xf]
        %v341 = vld [vmem:[%s333 + $0x1c] sm:$0xf]
        %v342 = vld [vmem:[%s333 + $0x20] sm:$0xf]
        %v343 = vld [vmem:[%s333 + $0x24] sm:$0xf]
        %v344 = vld [vmem:[%s333 + $0x28] sm:$0xf]
        %v345 = vld [vmem:[%s333 + $0x2c] sm:$0xf]
        %v346 = vld [vmem:[%s333 + $0x30] sm:$0xf]
        %v347 = vld [vmem:[%s333 + $0x34] sm:$0xf]
        %v348 = vld [vmem:[%s333 + $0x38] sm:$0xf]
        %v349 = vld [vmem:[%s333 + $0x3c] sm:$0xf]
        %v350 = vld [vmem:[%s333 + $0x40] sm:$0xf]
        %v351 = vld [vmem:[%s333 + $0x44] sm:$0xf]
        %v352 = vld [vmem:[%s333 + $0x48] sm:$0xf]
        %v353 = vld [vmem:[%s333 + $0x4c] sm:$0xf]
        %v354 = vld [vmem:[%s333 + $0x50] sm:$0xf]
        %v355 = vld [vmem:[%s333 + $0x54] sm:$0xf]
        %v356 = vld [vmem:[%s333 + $0x58] sm:$0xf]
        %v357 = vld [vmem:[%s333 + $0x5c] sm:$0xf]
        %v358 = vld [vmem:[%s333 + $0x60] sm:$0xf]
        %v359 = vld [vmem:[%s333 + $0x64] sm:$0xf]
        %v360 = vld [vmem:[%s333 + $0x68] sm:$0xf]
        %v361 = vld [vmem:[%s333 + $0x6c] sm:$0xf]
        %v362 = vld [vmem:[%s333 + $0x70] sm:$0xf]
        %v363 = vld [vmem:[%s333 + $0x74] sm:$0xf]
        %v364 = vld [vmem:[%s333 + $0x78] sm:$0xf]
        %v365 = vld [vmem:[%s333 + $0x7c] sm:$0xf]
        %v366 = vld [vmem:[%s333 + $0x80] sm:$0xf]
        %v367 = vld [vmem:[%s333 + $0x84] sm:$0xf]
        %v368 = vld [vmem:[%s333 + $0x88] sm:$0xf]
        %v369 = vld [vmem:[%s333 + $0x8c] sm:$0xf]
        %v370 = vld [vmem:[%s333 + $0x90] sm:$0xf]
        %v371 = vld [vmem:[%s333 + $0x94] sm:$0xf]
        %v372 = vld [vmem:[%s333 + $0x98] sm:$0xf]
        %v373 = vld [vmem:[%s333 + $0x9c] sm:$0xf]
        %v374 = vld [vmem:[#allocation6] sm:$0xf]
        %v375 = vld [vmem:[#allocation6 + $0x4] sm:$0xf]
        %v376 = vld [vmem:[#allocation6 + $0x8] sm:$0xf]
        %v377 = vld [vmem:[#allocation6 + $0xc] sm:$0xf]
        %v378 = vld [vmem:[#allocation6 + $0x10] sm:$0xf]
        %v379 = vld [vmem:[#allocation6 + $0x14] sm:$0xf]
        %v380 = vld [vmem:[#allocation6 + $0x18] sm:$0xf]
        %v381 = vld [vmem:[#allocation6 + $0x1c] sm:$0xf]
        %v382 = vld [vmem:[#allocation6 + $0x20] sm:$0xf]
        %v383 = vld [vmem:[#allocation6 + $0x24] sm:$0xf]
        %v384 = vld [vmem:[#allocation6 + $0x28] sm:$0xf]
        %v385 = vld [vmem:[#allocation6 + $0x2c] sm:$0xf]
        %v386 = vld [vmem:[#allocation6 + $0x30] sm:$0xf]
        %v387 = vld [vmem:[#allocation6 + $0x34] sm:$0xf]
        %v388 = vld [vmem:[#allocation6 + $0x38] sm:$0xf]
        %v389 = vld [vmem:[#allocation6 + $0x3c] sm:$0xf]
        %v430 = vunpack.c.l.b16 %v334
        %v431 = vunpack.c.l.b16 %v335
        %v432 = vunpack.c.l.b16 %v336
        %v433 = vunpack.c.l.b16 %v337
        %v434 = vunpack.c.l.b16 %v338
        %v435 = vunpack.c.l.b16 %v339
        %v436 = vunpack.c.l.b16 %v340
        %v437 = vunpack.c.l.b16 %v341
        %v438 = vunpack.c.l.b16 %v342
        %v439 = vunpack.c.l.b16 %v343
        %v440 = vunpack.c.l.b16 %v344
        %v441 = vunpack.c.l.b16 %v345
        %v442 = vunpack.c.l.b16 %v346
        %v443 = vunpack.c.l.b16 %v347
        %v444 = vunpack.c.l.b16 %v348
        %v445 = vunpack.c.l.b16 %v349
        %v446 = vunpack.c.l.b16 %v350
        %v447 = vunpack.c.l.b16 %v351
        %v448 = vunpack.c.l.b16 %v352
        %v449 = vunpack.c.l.b16 %v353
        %v450 = vunpack.c.l.b16 %v354
        %v451 = vunpack.c.l.b16 %v355
        %v452 = vunpack.c.l.b16 %v356
        %v453 = vunpack.c.l.b16 %v357
        %v454 = vunpack.c.l.b16 %v358
        %v455 = vunpack.c.l.b16 %v359
        %v456 = vunpack.c.l.b16 %v360
        %v457 = vunpack.c.l.b16 %v361
        %v458 = vunpack.c.l.b16 %v362
        %v459 = vunpack.c.l.b16 %v363
        %v460 = vunpack.c.l.b16 %v364
        %v461 = vunpack.c.l.b16 %v365
        %v462 = vunpack.c.l.b16 %v366
        %v463 = vunpack.c.l.b16 %v367
        %v464 = vunpack.c.l.b16 %v368
        %v465 = vunpack.c.l.b16 %v369
        %v466 = vunpack.c.l.b16 %v370
        %v467 = vunpack.c.l.b16 %v371
        %v468 = vunpack.c.l.b16 %v372
        %v469 = vunpack.c.l.b16 %v373
        %v470 = vpack.c.b16 %v431, %v430
        %v471 = vpack.c.b16 %v433, %v432
        %v472 = vpack.c.b16 %v435, %v434
        %v473 = vpack.c.b16 %v437, %v436
        %v474 = vpack.c.b16 %v439, %v438
        %v475 = vpack.c.b16 %v441, %v440
        %v476 = vpack.c.b16 %v443, %v442
        %v477 = vpack.c.b16 %v445, %v444
        %v478 = vpack.c.b16 %v447, %v446
        %v479 = vpack.c.b16 %v449, %v448
        %v480 = vpack.c.b16 %v451, %v450
        %v481 = vpack.c.b16 %v453, %v452
        %v482 = vpack.c.b16 %v455, %v454
        %v483 = vpack.c.b16 %v457, %v456
        %v484 = vpack.c.b16 %v459, %v458
        %v485 = vpack.c.b16 %v461, %v460
        %v486 = vpack.c.b16 %v463, %v462
        %v487 = vpack.c.b16 %v465, %v464
        %v488 = vpack.c.b16 %v467, %v466
        %v489 = vpack.c.b16 %v469, %v468
        %v526 = vunpack.c.l.b16 %v374
        %v527 = vunpack.c.l.b16 %v375
        %v528 = vunpack.c.l.b16 %v376
        %v529 = vunpack.c.l.b16 %v377
        %v530 = vunpack.c.l.b16 %v378
        %v531 = vunpack.c.l.b16 %v379
        %v532 = vunpack.c.l.b16 %v380
        %v533 = vunpack.c.l.b16 %v381
        %v534 = vunpack.c.l.b16 %v382
        %v535 = vunpack.c.l.b16 %v383
        %v536 = vunpack.c.l.b16 %v384
        %v537 = vunpack.c.l.b16 %v385
        %v538 = vunpack.c.l.b16 %v386
        %v539 = vunpack.c.l.b16 %v387
        %v540 = vunpack.c.l.b16 %v388
        %v541 = vunpack.c.l.b16 %v389
        %v542 = vpack.c.b16 %v527, %v526
        %v543 = vpack.c.b16 %v529, %v528
        %v544 = vpack.c.b16 %v531, %v530
        %v545 = vpack.c.b16 %v533, %v532
        %v546 = vpack.c.b16 %v535, %v534
        %v547 = vpack.c.b16 %v537, %v536
        %v548 = vpack.c.b16 %v539, %v538
        %v549 = vpack.c.b16 %v541, %v540
        %558 = vmatprep.subr.bf16.mxu0 0
        %559 = vmatpush1.bf16.msra.mxu0 %v549
        %560 = vmatprep.subr.bf16.mxu0 0
        %561 = vmatpush1.bf16.msra.mxu0 %v548
        %562 = vmatprep.subr.bf16.mxu0 0
        %563 = vmatpush1.bf16.msra.mxu0 %v547
        %564 = vmatprep.subr.bf16.mxu0 0
        %565 = vmatpush1.bf16.msra.mxu0 %v546
        %566 = vmatprep.subr.bf16.mxu0 0
        %567 = vmatpush1.bf16.msra.mxu0 %v545
        %568 = vmatprep.subr.bf16.mxu0 0
        %569 = vmatpush1.bf16.msra.mxu0 %v544
        %570 = vmatprep.subr.bf16.mxu0 0
        %571 = vmatpush1.bf16.msra.mxu0 %v543
        %572 = vmatprep.subr.bf16.mxu0 0
        %573 = vmatpush1.bf16.msra.mxu0 %v542
        %574 = vmatprep.subr.bf16.mxu0 0
        %575 = vmatpush2.bf16.msra.mxu0 0
        %576 = vmatprep.subr.bf16.mxu0 0
        %577 = vmatpush2.bf16.msra.mxu0 0
        %578 = vmatprep.subr.bf16.mxu0 0
        %579 = vmatpush2.bf16.msra.mxu0 0
        %580 = vmatprep.subr.bf16.mxu0 0
        %581 = vmatpush2.bf16.msra.mxu0 0
        %582 = vmatprep.subr.bf16.mxu0 0
        %583 = vmatpush2.bf16.msra.mxu0 0
        %584 = vmatprep.subr.bf16.mxu0 0
        %585 = vmatpush2.bf16.msra.mxu0 0
        %586 = vmatprep.subr.bf16.mxu0 0
        %587 = vmatpush2.bf16.msra.mxu0 0
        %588 = vmatprep.subr.bf16.mxu0 0
        %589 = vmatpush2.bf16.msra.mxu0 0
        %590 = vmatprep.mubr.bf16.mxu0 0
        %591 = vmatmul.mubr.bf16.gmra.mxu0 %v470
        %v592 = vpop.f32.mrf.mxu0
        %v593 = vadd.f32 0.0, %v592
        %v594 = vpop.f32.mrf.mxu0
        %v595 = vpop.f32.mrf.mxu0
        %v596 = vadd.f32 0.0, %v595
        %v597 = vpop.f32.mrf.mxu0
        %598 = vmatprep.mubr.bf16.mxu0 0
        %599 = vmatmul.mubr.bf16.gmra.mxu0 %v471
        %v600 = vpop.f32.mrf.mxu0
        %v601 = vadd.f32 0.0, %v600
        %v602 = vpop.f32.mrf.mxu0
        %v603 = vpop.f32.mrf.mxu0
        %v604 = vadd.f32 0.0, %v603
        %v605 = vpop.f32.mrf.mxu0
        %606 = vmatprep.mubr.bf16.mxu0 0
        %607 = vmatmul.mubr.bf16.gmra.mxu0 %v472
        %v608 = vpop.f32.mrf.mxu0
        %v609 = vadd.f32 0.0, %v608
        %v610 = vpop.f32.mrf.mxu0
        %v611 = vpop.f32.mrf.mxu0
        %v612 = vadd.f32 0.0, %v611
        %v613 = vpop.f32.mrf.mxu0
        %614 = vmatprep.mubr.bf16.mxu0 0
        %615 = vmatmul.mubr.bf16.gmra.mxu0 %v473
        %v616 = vpop.f32.mrf.mxu0
        %v617 = vadd.f32 0.0, %v616
        %v618 = vpop.f32.mrf.mxu0
        %v619 = vpop.f32.mrf.mxu0
        %v620 = vadd.f32 0.0, %v619
        %v621 = vpop.f32.mrf.mxu0
        %622 = vmatprep.mubr.bf16.mxu0 0
        %623 = vmatmul.mubr.bf16.gmra.mxu0 %v474
        %v624 = vpop.f32.mrf.mxu0
        %v625 = vadd.f32 0.0, %v624
        %v626 = vpop.f32.mrf.mxu0
        %v627 = vpop.f32.mrf.mxu0
        %v628 = vadd.f32 0.0, %v627
        %v629 = vpop.f32.mrf.mxu0
        %630 = vmatprep.mubr.bf16.mxu0 0
        %631 = vmatmul.mubr.bf16.gmra.mxu0 %v475
        %v632 = vpop.f32.mrf.mxu0
        %v633 = vadd.f32 0.0, %v632
        %v634 = vpop.f32.mrf.mxu0
        %v635 = vpop.f32.mrf.mxu0
        %v636 = vadd.f32 0.0, %v635
        %v637 = vpop.f32.mrf.mxu0
        %638 = vmatprep.mubr.bf16.mxu0 0
        %639 = vmatmul.mubr.bf16.gmra.mxu0 %v476
        %v640 = vpop.f32.mrf.mxu0
        %v641 = vadd.f32 0.0, %v640
        %v642 = vpop.f32.mrf.mxu0
        %v643 = vpop.f32.mrf.mxu0
        %v644 = vadd.f32 0.0, %v643
        %v645 = vpop.f32.mrf.mxu0
        %646 = vmatprep.mubr.bf16.mxu0 0
        %647 = vmatmul.mubr.bf16.gmra.mxu0 %v477
        %v648 = vpop.f32.mrf.mxu0
        %v649 = vadd.f32 0.0, %v648
        %v650 = vpop.f32.mrf.mxu0
        %v651 = vpop.f32.mrf.mxu0
        %v652 = vadd.f32 0.0, %v651
        %v653 = vpop.f32.mrf.mxu0
        %654 = vmatprep.mubr.bf16.mxu0 0
        %655 = vmatmul.mubr.bf16.gmra.mxu0 %v478
        %v656 = vpop.f32.mrf.mxu0
        %v657 = vadd.f32 0.0, %v656
        %v658 = vpop.f32.mrf.mxu0
        %v659 = vpop.f32.mrf.mxu0
        %v660 = vadd.f32 0.0, %v659
        %v661 = vpop.f32.mrf.mxu0
        %662 = vmatprep.mubr.bf16.mxu0 0
        %663 = vmatmul.mubr.bf16.gmra.mxu0 %v479
        %v664 = vpop.f32.mrf.mxu0
        %v665 = vadd.f32 0.0, %v664
        %v666 = vpop.f32.mrf.mxu0
        %v667 = vpop.f32.mrf.mxu0
        %v668 = vadd.f32 0.0, %v667
        %v669 = vpop.f32.mrf.mxu0
        %670 = vmatprep.mubr.bf16.mxu0 0
        %671 = vmatmul.mubr.bf16.gmra.mxu0 %v480
        %v672 = vpop.f32.mrf.mxu0
        %v673 = vadd.f32 0.0, %v672
        %v674 = vpop.f32.mrf.mxu0
        %v675 = vpop.f32.mrf.mxu0
        %v676 = vadd.f32 0.0, %v675
        %v677 = vpop.f32.mrf.mxu0
        %678 = vmatprep.mubr.bf16.mxu0 0
        %679 = vmatmul.mubr.bf16.gmra.mxu0 %v481
        %v680 = vpop.f32.mrf.mxu0
        %v681 = vadd.f32 0.0, %v680
        %v682 = vpop.f32.mrf.mxu0
        %v683 = vpop.f32.mrf.mxu0
        %v684 = vadd.f32 0.0, %v683
        %v685 = vpop.f32.mrf.mxu0
        %686 = vmatprep.mubr.bf16.mxu0 0
        %687 = vmatmul.mubr.bf16.gmra.mxu0 %v482
        %v688 = vpop.f32.mrf.mxu0
        %v689 = vadd.f32 0.0, %v688
        %v690 = vpop.f32.mrf.mxu0
        %v691 = vpop.f32.mrf.mxu0
        %v692 = vadd.f32 0.0, %v691
        %v693 = vpop.f32.mrf.mxu0
        %694 = vmatprep.mubr.bf16.mxu0 0
        %695 = vmatmul.mubr.bf16.gmra.mxu0 %v483
        %v696 = vpop.f32.mrf.mxu0
        %v697 = vadd.f32 0.0, %v696
        %v698 = vpop.f32.mrf.mxu0
        %v699 = vpop.f32.mrf.mxu0
        %v700 = vadd.f32 0.0, %v699
        %v701 = vpop.f32.mrf.mxu0
        %702 = vmatprep.mubr.bf16.mxu0 0
        %703 = vmatmul.mubr.bf16.gmra.mxu0 %v484
        %v704 = vpop.f32.mrf.mxu0
        %v705 = vadd.f32 0.0, %v704
        %v706 = vpop.f32.mrf.mxu0
        %v707 = vpop.f32.mrf.mxu0
        %v708 = vadd.f32 0.0, %v707
        %v709 = vpop.f32.mrf.mxu0
        %710 = vmatprep.mubr.bf16.mxu0 0
        %711 = vmatmul.mubr.bf16.gmra.mxu0 %v485
        %v712 = vpop.f32.mrf.mxu0
        %v713 = vadd.f32 0.0, %v712
        %v714 = vpop.f32.mrf.mxu0
        %v715 = vpop.f32.mrf.mxu0
        %v716 = vadd.f32 0.0, %v715
        %v717 = vpop.f32.mrf.mxu0
        %718 = vmatprep.mubr.bf16.mxu0 0
        %719 = vmatmul.mubr.bf16.gmra.mxu0 %v486
        %v720 = vpop.f32.mrf.mxu0
        %v721 = vadd.f32 0.0, %v720
        %v722 = vpop.f32.mrf.mxu0
        %v723 = vpop.f32.mrf.mxu0
        %v724 = vadd.f32 0.0, %v723
        %v725 = vpop.f32.mrf.mxu0
        %726 = vmatprep.mubr.bf16.mxu0 0
        %727 = vmatmul.mubr.bf16.gmra.mxu0 %v487
        %v728 = vpop.f32.mrf.mxu0
        %v729 = vadd.f32 0.0, %v728
        %v730 = vpop.f32.mrf.mxu0
        %v731 = vpop.f32.mrf.mxu0
        %v732 = vadd.f32 0.0, %v731
        %v733 = vpop.f32.mrf.mxu0
        %734 = vmatprep.mubr.bf16.mxu0 0
        %735 = vmatmul.mubr.bf16.gmra.mxu0 %v488
        %v736 = vpop.f32.mrf.mxu0
        %v737 = vadd.f32 0.0, %v736
        %v738 = vpop.f32.mrf.mxu0
        %v739 = vpop.f32.mrf.mxu0
        %v740 = vadd.f32 0.0, %v739
        %v741 = vpop.f32.mrf.mxu0
        %742 = vmatprep.mubr.bf16.mxu0 0
        %743 = vmatmul.mubr.bf16.gmra.mxu0 %v489
        %v744 = vpop.f32.mrf.mxu0
        %v745 = vadd.f32 0.0, %v744
        %v746 = vpop.f32.mrf.mxu0
        %v747 = vpop.f32.mrf.mxu0
        %v748 = vadd.f32 0.0, %v747
        %v749 = vpop.f32.mrf.mxu0
        %750 = vdwg.mxu0
        %v751 = vmax.f32 %v593, 0.0
        %v752 = vmax.f32 %v596, 0.0
        %v753 = vmax.f32 %v601, 0.0
        %v754 = vmax.f32 %v604, 0.0
        %v755 = vmax.f32 %v609, 0.0
        %v756 = vmax.f32 %v612, 0.0
        %v757 = vmax.f32 %v617, 0.0
        %v758 = vmax.f32 %v620, 0.0
        %v759 = vmax.f32 %v625, 0.0
        %v760 = vmax.f32 %v628, 0.0
        %v761 = vmax.f32 %v633, 0.0
        %v762 = vmax.f32 %v636, 0.0
        %v763 = vmax.f32 %v641, 0.0
        %v764 = vmax.f32 %v644, 0.0
        %v765 = vmax.f32 %v649, 0.0
        %v766 = vmax.f32 %v652, 0.0
        %v767 = vmax.f32 %v657, 0.0
        %v768 = vmax.f32 %v660, 0.0
        %v769 = vmax.f32 %v665, 0.0
        %v770 = vmax.f32 %v668, 0.0
        %v771 = vmax.f32 %v673, 0.0
        %v772 = vmax.f32 %v676, 0.0
        %v773 = vmax.f32 %v681, 0.0
        %v774 = vmax.f32 %v684, 0.0
        %v775 = vmax.f32 %v689, 0.0
        %v776 = vmax.f32 %v692, 0.0
        %v777 = vmax.f32 %v697, 0.0
        %v778 = vmax.f32 %v700, 0.0
        %v779 = vmax.f32 %v705, 0.0
        %v780 = vmax.f32 %v708, 0.0
        %v781 = vmax.f32 %v713, 0.0
        %v782 = vmax.f32 %v716, 0.0
        %v783 = vmax.f32 %v721, 0.0
        %v784 = vmax.f32 %v724, 0.0
        %v785 = vmax.f32 %v729, 0.0
        %v786 = vmax.f32 %v732, 0.0
        %v787 = vmax.f32 %v737, 0.0
        %v788 = vmax.f32 %v740, 0.0
        %v789 = vmax.f32 %v745, 0.0
        %v790 = vmax.f32 %v748, 0.0
        %791 = vst [vmem:[#allocation2] sm:$0xff] %v751
        %792 = vst [vmem:[#allocation2 + $0x8] sm:$0xff] %v752
        %793 = vst [vmem:[#allocation2 + $0x10] sm:$0xff] %v753
        %794 = vst [vmem:[#allocation2 + $0x18] sm:$0xff] %v754
        %795 = vst [vmem:[#allocation2 + $0x20] sm:$0xff] %v755
        %796 = vst [vmem:[#allocation2 + $0x28] sm:$0xff] %v756
        %797 = vst [vmem:[#allocation2 + $0x30] sm:$0xff] %v757
        %798 = vst [vmem:[#allocation2 + $0x38] sm:$0xff] %v758
        %799 = vst [vmem:[#allocation2 + $0x40] sm:$0xff] %v759
        %800 = vst [vmem:[#allocation2 + $0x48] sm:$0xff] %v760
        %801 = vst [vmem:[#allocation2 + $0x50] sm:$0xff] %v761
        %802 = vst [vmem:[#allocation2 + $0x58] sm:$0xff] %v762
        %803 = vst [vmem:[#allocation2 + $0x60] sm:$0xff] %v763
        %804 = vst [vmem:[#allocation2 + $0x68] sm:$0xff] %v764
        %805 = vst [vmem:[#allocation2 + $0x70] sm:$0xff] %v765
        %806 = vst [vmem:[#allocation2 + $0x78] sm:$0xff] %v766
        %807 = vst [vmem:[#allocation2 + $0x80] sm:$0xff] %v767
        %808 = vst [vmem:[#allocation2 + $0x88] sm:$0xff] %v768
        %809 = vst [vmem:[#allocation2 + $0x90] sm:$0xff] %v769
        %810 = vst [vmem:[#allocation2 + $0x98] sm:$0xff] %v770
        %811 = vst [vmem:[#allocation2 + $0xa0] sm:$0xff] %v771
        %812 = vst [vmem:[#allocation2 + $0xa8] sm:$0xff] %v772
        %813 = vst [vmem:[#allocation2 + $0xb0] sm:$0xff] %v773
        %814 = vst [vmem:[#allocation2 + $0xb8] sm:$0xff] %v774
        %815 = vst [vmem:[#allocation2 + $0xc0] sm:$0xff] %v775
        %816 = vst [vmem:[#allocation2 + $0xc8] sm:$0xff] %v776
        %817 = vst [vmem:[#allocation2 + $0xd0] sm:$0xff] %v777
        %818 = vst [vmem:[#allocation2 + $0xd8] sm:$0xff] %v778
        %819 = vst [vmem:[#allocation2 + $0xe0] sm:$0xff] %v779
        %820 = vst [vmem:[#allocation2 + $0xe8] sm:$0xff] %v780
        %821 = vst [vmem:[#allocation2 + $0xf0] sm:$0xff] %v781
        %822 = vst [vmem:[#allocation2 + $0xf8] sm:$0xff] %v782
        %823 = vst [vmem:[#allocation2 + $0x100] sm:$0xff] %v783
        %824 = vst [vmem:[#allocation2 + $0x108] sm:$0xff] %v784
        %825 = vst [vmem:[#allocation2 + $0x110] sm:$0xff] %v785
        %826 = vst [vmem:[#allocation2 + $0x118] sm:$0xff] %v786
        %827 = vst [vmem:[#allocation2 + $0x120] sm:$0xff] %v787
        %828 = vst [vmem:[#allocation2 + $0x128] sm:$0xff] %v788
        %829 = vst [vmem:[#allocation2 + $0x130] sm:$0xff] %v789
        %830 = vst [vmem:[#allocation2 + $0x138] sm:$0xff] %v790
        %v831 = vld [vmem:[#allocation8] sm:$0xff]
        %v832 = vld [vmem:[#allocation8 + $0x8] sm:$0x1]
        %v833 = vld [vmem:[#allocation2] sm:$0xff]
        %v834 = vld [vmem:[#allocation2 + $0x8] sm:$0xff]
        %v835 = vld [vmem:[#allocation2 + $0x20] sm:$0xff]
        %v836 = vld [vmem:[#allocation2 + $0x28] sm:$0xff]
        %v837 = vld [vmem:[#allocation2 + $0x40] sm:$0xff]
        %v838 = vld [vmem:[#allocation2 + $0x48] sm:$0xff]
        %v839 = vld [vmem:[#allocation2 + $0x60] sm:$0xff]
        %v840 = vld [vmem:[#allocation2 + $0x68] sm:$0xff]
        %v841 = vld [vmem:[#allocation2 + $0x80] sm:$0xff]
        %v842 = vld [vmem:[#allocation2 + $0x88] sm:$0xff]
        %v843 = vld [vmem:[#allocation2 + $0xa0] sm:$0xff]
        %v844 = vld [vmem:[#allocation2 + $0xa8] sm:$0xff]
        %v845 = vld [vmem:[#allocation2 + $0xc0] sm:$0xff]
        %v846 = vld [vmem:[#allocation2 + $0xc8] sm:$0xff]
        %v847 = vld [vmem:[#allocation2 + $0xe0] sm:$0xff]
        %v848 = vld [vmem:[#allocation2 + $0xe8] sm:$0xff]
        %v849 = vlaneseq
        %v850 = vshrl.u32 %v849, 7
        %v851 = vsub.s32 0, %v850
        %v852 = vrot.slane %v831, %v851
        %v853 = vmul.f32 %v833, %v852
        %v854 = vmul.f32 %v834, %v852
        %v855 = vmul.f32 %v835, %v852
        %v856 = vmul.f32 %v836, %v852
        %v857 = vmul.f32 %v837, %v852
        %v858 = vmul.f32 %v838, %v852
        %v859 = vmul.f32 %v839, %v852
        %v860 = vmul.f32 %v840, %v852
        %v861 = vmul.f32 %v841, %v852
        %v862 = vmul.f32 %v842, %v852
        %v863 = vmul.f32 %v843, %v852
        %v864 = vmul.f32 %v844, %v852
        %v865 = vmul.f32 %v845, %v852
        %v866 = vmul.f32 %v846, %v852
        %v867 = vmul.f32 %v847, %v852
        %v868 = vmul.f32 %v848, %v852
        %v869 = vadd.f32 %v853, 0.0
        %v870 = vadd.f32 %v854, 0.0
        %v871 = vadd.f32 %v855, 0.0
        %v872 = vadd.f32 %v856, 0.0
        %v873 = vadd.f32 %v857, 0.0
        %v874 = vadd.f32 %v858, 0.0
        %v875 = vadd.f32 %v859, 0.0
        %v876 = vadd.f32 %v860, 0.0
        %v877 = vadd.f32 %v861, 0.0
        %v878 = vadd.f32 %v862, 0.0
        %v879 = vadd.f32 %v863, 0.0
        %v880 = vadd.f32 %v864, 0.0
        %v881 = vadd.f32 %v865, 0.0
        %v882 = vadd.f32 %v866, 0.0
        %v883 = vadd.f32 %v867, 0.0
        %v884 = vadd.f32 %v868, 0.0
        %v885 = vld [vmem:[#allocation2 + $0x1] sm:$0xff]
        %v886 = vld [vmem:[#allocation2 + $0x9] sm:$0xff]
        %v887 = vld [vmem:[#allocation2 + $0x21] sm:$0xff]
        %v888 = vld [vmem:[#allocation2 + $0x29] sm:$0xff]
        %v889 = vld [vmem:[#allocation2 + $0x41] sm:$0xff]
        %v890 = vld [vmem:[#allocation2 + $0x49] sm:$0xff]
        %v891 = vld [vmem:[#allocation2 + $0x61] sm:$0xff]
        %v892 = vld [vmem:[#allocation2 + $0x69] sm:$0xff]
        %v893 = vld [vmem:[#allocation2 + $0x81] sm:$0xff]
        %v894 = vld [vmem:[#allocation2 + $0x89] sm:$0xff]
        %v895 = vld [vmem:[#allocation2 + $0xa1] sm:$0xff]
        %v896 = vld [vmem:[#allocation2 + $0xa9] sm:$0xff]
        %v897 = vld [vmem:[#allocation2 + $0xc1] sm:$0xff]
        %v898 = vld [vmem:[#allocation2 + $0xc9] sm:$0xff]
        %v899 = vld [vmem:[#allocation2 + $0xe1] sm:$0xff]
        %v900 = vld [vmem:[#allocation2 + $0xe9] sm:$0xff]
        %v901 = vlaneseq
        %v902 = vshrl.u32 %v901, 7
        %v903 = vsub.s32 1, %v902
        %v904 = vrot.slane %v831, %v903
        %v905 = vmul.f32 %v885, %v904
        %v906 = vmul.f32 %v886, %v904
        %v907 = vmul.f32 %v887, %v904
        %v908 = vmul.f32 %v888, %v904
        %v909 = vmul.f32 %v889, %v904
        %v910 = vmul.f32 %v890, %v904
        %v911 = vmul.f32 %v891, %v904
        %v912 = vmul.f32 %v892, %v904
        %v913 = vmul.f32 %v893, %v904
        %v914 = vmul.f32 %v894, %v904
        %v915 = vmul.f32 %v895, %v904
        %v916 = vmul.f32 %v896, %v904
        %v917 = vmul.f32 %v897, %v904
        %v918 = vmul.f32 %v898, %v904
        %v919 = vmul.f32 %v899, %v904
        %v920 = vmul.f32 %v900, %v904
        %v921 = vadd.f32 %v869, %v905
        %v922 = vadd.f32 %v870, %v906
        %v923 = vadd.f32 %v871, %v907
        %v924 = vadd.f32 %v872, %v908
        %v925 = vadd.f32 %v873, %v909
        %v926 = vadd.f32 %v874, %v910
        %v927 = vadd.f32 %v875, %v911
        %v928 = vadd.f32 %v876, %v912
        %v929 = vadd.f32 %v877, %v913
        %v930 = vadd.f32 %v878, %v914
        %v931 = vadd.f32 %v879, %v915
        %v932 = vadd.f32 %v880, %v916
        %v933 = vadd.f32 %v881, %v917
        %v934 = vadd.f32 %v882, %v918
        %v935 = vadd.f32 %v883, %v919
        %v936 = vadd.f32 %v884, %v920
        %v937 = vld [vmem:[#allocation2 + $0x2] sm:$0xff]
        %v938 = vld [vmem:[#allocation2 + $0xa] sm:$0xff]
        %v939 = vld [vmem:[#allocation2 + $0x22] sm:$0xff]
        %v940 = vld [vmem:[#allocation2 + $0x2a] sm:$0xff]
        %v941 = vld [vmem:[#allocation2 + $0x42] sm:$0xff]
        %v942 = vld [vmem:[#allocation2 + $0x4a] sm:$0xff]
        %v943 = vld [vmem:[#allocation2 + $0x62] sm:$0xff]
        %v944 = vld [vmem:[#allocation2 + $0x6a] sm:$0xff]
        %v945 = vld [vmem:[#allocation2 + $0x82] sm:$0xff]
        %v946 = vld [vmem:[#allocation2 + $0x8a] sm:$0xff]
        %v947 = vld [vmem:[#allocation2 + $0xa2] sm:$0xff]
        %v948 = vld [vmem:[#allocation2 + $0xaa] sm:$0xff]
        %v949 = vld [vmem:[#allocation2 + $0xc2] sm:$0xff]
        %v950 = vld [vmem:[#allocation2 + $0xca] sm:$0xff]
        %v951 = vld [vmem:[#allocation2 + $0xe2] sm:$0xff]
        %v952 = vld [vmem:[#allocation2 + $0xea] sm:$0xff]
        %v953 = vlaneseq
        %v954 = vshrl.u32 %v953, 7
        %v955 = vsub.s32 2, %v954
        %v956 = vrot.slane %v831, %v955
        %v957 = vmul.f32 %v937, %v956
        %v958 = vmul.f32 %v938, %v956
        %v959 = vmul.f32 %v939, %v956
        %v960 = vmul.f32 %v940, %v956
        %v961 = vmul.f32 %v941, %v956
        %v962 = vmul.f32 %v942, %v956
        %v963 = vmul.f32 %v943, %v956
        %v964 = vmul.f32 %v944, %v956
        %v965 = vmul.f32 %v945, %v956
        %v966 = vmul.f32 %v946, %v956
        %v967 = vmul.f32 %v947, %v956
        %v968 = vmul.f32 %v948, %v956
        %v969 = vmul.f32 %v949, %v956
        %v970 = vmul.f32 %v950, %v956
        %v971 = vmul.f32 %v951, %v956
        %v972 = vmul.f32 %v952, %v956
        %v973 = vadd.f32 %v921, %v957
        %v974 = vadd.f32 %v922, %v958
        %v975 = vadd.f32 %v923, %v959
        %v976 = vadd.f32 %v924, %v960
        %v977 = vadd.f32 %v925, %v961
        %v978 = vadd.f32 %v926, %v962
        %v979 = vadd.f32 %v927, %v963
        %v980 = vadd.f32 %v928, %v964
        %v981 = vadd.f32 %v929, %v965
        %v982 = vadd.f32 %v930, %v966
        %v983 = vadd.f32 %v931, %v967
        %v984 = vadd.f32 %v932, %v968
        %v985 = vadd.f32 %v933, %v969
        %v986 = vadd.f32 %v934, %v970
        %v987 = vadd.f32 %v935, %v971
        %v988 = vadd.f32 %v936, %v972
        %s989 = scalar_lea.vmem [#allocation2], 32
        %v990 = vld [vmem:[%s989] sm:$0xff]
        %v991 = vld [vmem:[%s989 + $0x8] sm:$0xff]
        %v992 = vld [vmem:[%s989 + $0x20] sm:$0xff]
        %v993 = vld [vmem:[%s989 + $0x28] sm:$0xff]
        %v994 = vld [vmem:[%s989 + $0x40] sm:$0xff]
        %v995 = vld [vmem:[%s989 + $0x48] sm:$0xff]
        %v996 = vld [vmem:[%s989 + $0x60] sm:$0xff]
        %v997 = vld [vmem:[%s989 + $0x68] sm:$0xff]
        %v998 = vld [vmem:[%s989 + $0x80] sm:$0xff]
        %v999 = vld [vmem:[%s989 + $0x88] sm:$0xff]
        %v1000 = vld [vmem:[%s989 + $0xa0] sm:$0xff]
        %v1001 = vld [vmem:[%s989 + $0xa8] sm:$0xff]
        %v1002 = vld [vmem:[%s989 + $0xc0] sm:$0xff]
        %v1003 = vld [vmem:[%s989 + $0xc8] sm:$0xff]
        %v1004 = vld [vmem:[%s989 + $0xe0] sm:$0xff]
        %v1005 = vld [vmem:[%s989 + $0xe8] sm:$0xff]
        %v1006 = vlaneseq
        %v1007 = vshrl.u32 %v1006, 7
        %v1008 = vsub.s32 3, %v1007
        %v1009 = vrot.slane %v831, %v1008
        %v1010 = vmul.f32 %v990, %v1009
        %v1011 = vmul.f32 %v991, %v1009
        %v1012 = vmul.f32 %v992, %v1009
        %v1013 = vmul.f32 %v993, %v1009
        %v1014 = vmul.f32 %v994, %v1009
        %v1015 = vmul.f32 %v995, %v1009
        %v1016 = vmul.f32 %v996, %v1009
        %v1017 = vmul.f32 %v997, %v1009
        %v1018 = vmul.f32 %v998, %v1009
        %v1019 = vmul.f32 %v999, %v1009
        %v1020 = vmul.f32 %v1000, %v1009
        %v1021 = vmul.f32 %v1001, %v1009
        %v1022 = vmul.f32 %v1002, %v1009
        %v1023 = vmul.f32 %v1003, %v1009
        %v1024 = vmul.f32 %v1004, %v1009
        %v1025 = vmul.f32 %v1005, %v1009
        %v1026 = vadd.f32 %v973, %v1010
        %v1027 = vadd.f32 %v974, %v1011
        %v1028 = vadd.f32 %v975, %v1012
        %v1029 = vadd.f32 %v976, %v1013
        %v1030 = vadd.f32 %v977, %v1014
        %v1031 = vadd.f32 %v978, %v1015
        %v1032 = vadd.f32 %v979, %v1016
        %v1033 = vadd.f32 %v980, %v1017
        %v1034 = vadd.f32 %v981, %v1018
        %v1035 = vadd.f32 %v982, %v1019
        %v1036 = vadd.f32 %v983, %v1020
        %v1037 = vadd.f32 %v984, %v1021
        %v1038 = vadd.f32 %v985, %v1022
        %v1039 = vadd.f32 %v986, %v1023
        %v1040 = vadd.f32 %v987, %v1024
        %v1041 = vadd.f32 %v988, %v1025
        %v1042 = vld [vmem:[%s989 + $0x1] sm:$0xff]
        %v1043 = vld [vmem:[%s989 + $0x9] sm:$0xff]
        %v1044 = vld [vmem:[%s989 + $0x21] sm:$0xff]
        %v1045 = vld [vmem:[%s989 + $0x29] sm:$0xff]
        %v1046 = vld [vmem:[%s989 + $0x41] sm:$0xff]
        %v1047 = vld [vmem:[%s989 + $0x49] sm:$0xff]
        %v1048 = vld [vmem:[%s989 + $0x61] sm:$0xff]
        %v1049 = vld [vmem:[%s989 + $0x69] sm:$0xff]
        %v1050 = vld [vmem:[%s989 + $0x81] sm:$0xff]
        %v1051 = vld [vmem:[%s989 + $0x89] sm:$0xff]
        %v1052 = vld [vmem:[%s989 + $0xa1] sm:$0xff]
        %v1053 = vld [vmem:[%s989 + $0xa9] sm:$0xff]
        %v1054 = vld [vmem:[%s989 + $0xc1] sm:$0xff]
        %v1055 = vld [vmem:[%s989 + $0xc9] sm:$0xff]
        %v1056 = vld [vmem:[%s989 + $0xe1] sm:$0xff]
        %v1057 = vld [vmem:[%s989 + $0xe9] sm:$0xff]
        %v1058 = vlaneseq
        %v1059 = vshrl.u32 %v1058, 7
        %v1060 = vsub.s32 4, %v1059
        %v1061 = vrot.slane %v831, %v1060
        %v1062 = vmul.f32 %v1042, %v1061
        %v1063 = vmul.f32 %v1043, %v1061
        %v1064 = vmul.f32 %v1044, %v1061
        %v1065 = vmul.f32 %v1045, %v1061
        %v1066 = vmul.f32 %v1046, %v1061
        %v1067 = vmul.f32 %v1047, %v1061
        %v1068 = vmul.f32 %v1048, %v1061
        %v1069 = vmul.f32 %v1049, %v1061
        %v1070 = vmul.f32 %v1050, %v1061
        %v1071 = vmul.f32 %v1051, %v1061
        %v1072 = vmul.f32 %v1052, %v1061
        %v1073 = vmul.f32 %v1053, %v1061
        %v1074 = vmul.f32 %v1054, %v1061
        %v1075 = vmul.f32 %v1055, %v1061
        %v1076 = vmul.f32 %v1056, %v1061
        %v1077 = vmul.f32 %v1057, %v1061
        %v1078 = vadd.f32 %v1026, %v1062
        %v1079 = vadd.f32 %v1027, %v1063
        %v1080 = vadd.f32 %v1028, %v1064
        %v1081 = vadd.f32 %v1029, %v1065
        %v1082 = vadd.f32 %v1030, %v1066
        %v1083 = vadd.f32 %v1031, %v1067
        %v1084 = vadd.f32 %v1032, %v1068
        %v1085 = vadd.f32 %v1033, %v1069
        %v1086 = vadd.f32 %v1034, %v1070
        %v1087 = vadd.f32 %v1035, %v1071
        %v1088 = vadd.f32 %v1036, %v1072
        %v1089 = vadd.f32 %v1037, %v1073
        %v1090 = vadd.f32 %v1038, %v1074
        %v1091 = vadd.f32 %v1039, %v1075
        %v1092 = vadd.f32 %v1040, %v1076
        %v1093 = vadd.f32 %v1041, %v1077
        %v1094 = vld [vmem:[%s989 + $0x2] sm:$0xff]
        %v1095 = vld [vmem:[%s989 + $0xa] sm:$0xff]
        %v1096 = vld [vmem:[%s989 + $0x22] sm:$0xff]
        %v1097 = vld [vmem:[%s989 + $0x2a] sm:$0xff]
        %v1098 = vld [vmem:[%s989 + $0x42] sm:$0xff]
        %v1099 = vld [vmem:[%s989 + $0x4a] sm:$0xff]
        %v1100 = vld [vmem:[%s989 + $0x62] sm:$0xff]
        %v1101 = vld [vmem:[%s989 + $0x6a] sm:$0xff]
        %v1102 = vld [vmem:[%s989 + $0x82] sm:$0xff]
        %v1103 = vld [vmem:[%s989 + $0x8a] sm:$0xff]
        %v1104 = vld [vmem:[%s989 + $0xa2] sm:$0xff]
        %v1105 = vld [vmem:[%s989 + $0xaa] sm:$0xff]
        %v1106 = vld [vmem:[%s989 + $0xc2] sm:$0xff]
        %v1107 = vld [vmem:[%s989 + $0xca] sm:$0xff]
        %v1108 = vld [vmem:[%s989 + $0xe2] sm:$0xff]
        %v1109 = vld [vmem:[%s989 + $0xea] sm:$0xff]
        %v1110 = vlaneseq
        %v1111 = vshrl.u32 %v1110, 7
        %v1112 = vsub.s32 5, %v1111
        %v1113 = vrot.slane %v831, %v1112
        %v1114 = vmul.f32 %v1094, %v1113
        %v1115 = vmul.f32 %v1095, %v1113
        %v1116 = vmul.f32 %v1096, %v1113
        %v1117 = vmul.f32 %v1097, %v1113
        %v1118 = vmul.f32 %v1098, %v1113
        %v1119 = vmul.f32 %v1099, %v1113
        %v1120 = vmul.f32 %v1100, %v1113
        %v1121 = vmul.f32 %v1101, %v1113
        %v1122 = vmul.f32 %v1102, %v1113
        %v1123 = vmul.f32 %v1103, %v1113
        %v1124 = vmul.f32 %v1104, %v1113
        %v1125 = vmul.f32 %v1105, %v1113
        %v1126 = vmul.f32 %v1106, %v1113
        %v1127 = vmul.f32 %v1107, %v1113
        %v1128 = vmul.f32 %v1108, %v1113
        %v1129 = vmul.f32 %v1109, %v1113
        %v1130 = vadd.f32 %v1078, %v1114
        %v1131 = vadd.f32 %v1079, %v1115
        %v1132 = vadd.f32 %v1080, %v1116
        %v1133 = vadd.f32 %v1081, %v1117
        %v1134 = vadd.f32 %v1082, %v1118
        %v1135 = vadd.f32 %v1083, %v1119
        %v1136 = vadd.f32 %v1084, %v1120
        %v1137 = vadd.f32 %v1085, %v1121
        %v1138 = vadd.f32 %v1086, %v1122
        %v1139 = vadd.f32 %v1087, %v1123
        %v1140 = vadd.f32 %v1088, %v1124
        %v1141 = vadd.f32 %v1089, %v1125
        %v1142 = vadd.f32 %v1090, %v1126
        %v1143 = vadd.f32 %v1091, %v1127
        %v1144 = vadd.f32 %v1092, %v1128
        %v1145 = vadd.f32 %v1093, %v1129
        %s1146 = scalar_lea.vmem [#allocation2], 64
        %v1147 = vld [vmem:[%s1146] sm:$0xff]
        %v1148 = vld [vmem:[%s1146 + $0x8] sm:$0xff]
        %v1149 = vld [vmem:[%s1146 + $0x20] sm:$0xff]
        %v1150 = vld [vmem:[%s1146 + $0x28] sm:$0xff]
        %v1151 = vld [vmem:[%s1146 + $0x40] sm:$0xff]
        %v1152 = vld [vmem:[%s1146 + $0x48] sm:$0xff]
        %v1153 = vld [vmem:[%s1146 + $0x60] sm:$0xff]
        %v1154 = vld [vmem:[%s1146 + $0x68] sm:$0xff]
        %v1155 = vld [vmem:[%s1146 + $0x80] sm:$0xff]
        %v1156 = vld [vmem:[%s1146 + $0x88] sm:$0xff]
        %v1157 = vld [vmem:[%s1146 + $0xa0] sm:$0xff]
        %v1158 = vld [vmem:[%s1146 + $0xa8] sm:$0xff]
        %v1159 = vld [vmem:[%s1146 + $0xc0] sm:$0xff]
        %v1160 = vld [vmem:[%s1146 + $0xc8] sm:$0xff]
        %v1161 = vld [vmem:[%s1146 + $0xe0] sm:$0xff]
        %v1162 = vld [vmem:[%s1146 + $0xe8] sm:$0xff]
        %v1163 = vlaneseq
        %v1164 = vshrl.u32 %v1163, 7
        %v1165 = vsub.s32 6, %v1164
        %v1166 = vrot.slane %v831, %v1165
        %v1167 = vmul.f32 %v1147, %v1166
        %v1168 = vmul.f32 %v1148, %v1166
        %v1169 = vmul.f32 %v1149, %v1166
        %v1170 = vmul.f32 %v1150, %v1166
        %v1171 = vmul.f32 %v1151, %v1166
        %v1172 = vmul.f32 %v1152, %v1166
        %v1173 = vmul.f32 %v1153, %v1166
        %v1174 = vmul.f32 %v1154, %v1166
        %v1175 = vmul.f32 %v1155, %v1166
        %v1176 = vmul.f32 %v1156, %v1166
        %v1177 = vmul.f32 %v1157, %v1166
        %v1178 = vmul.f32 %v1158, %v1166
        %v1179 = vmul.f32 %v1159, %v1166
        %v1180 = vmul.f32 %v1160, %v1166
        %v1181 = vmul.f32 %v1161, %v1166
        %v1182 = vmul.f32 %v1162, %v1166
        %v1183 = vadd.f32 %v1130, %v1167
        %v1184 = vadd.f32 %v1131, %v1168
        %v1185 = vadd.f32 %v1132, %v1169
        %v1186 = vadd.f32 %v1133, %v1170
        %v1187 = vadd.f32 %v1134, %v1171
        %v1188 = vadd.f32 %v1135, %v1172
        %v1189 = vadd.f32 %v1136, %v1173
        %v1190 = vadd.f32 %v1137, %v1174
        %v1191 = vadd.f32 %v1138, %v1175
        %v1192 = vadd.f32 %v1139, %v1176
        %v1193 = vadd.f32 %v1140, %v1177
        %v1194 = vadd.f32 %v1141, %v1178
        %v1195 = vadd.f32 %v1142, %v1179
        %v1196 = vadd.f32 %v1143, %v1180
        %v1197 = vadd.f32 %v1144, %v1181
        %v1198 = vadd.f32 %v1145, %v1182
        %v1199 = vld [vmem:[%s1146 + $0x1] sm:$0xff]
        %v1200 = vld [vmem:[%s1146 + $0x9] sm:$0xff]
        %v1201 = vld [vmem:[%s1146 + $0x21] sm:$0xff]
        %v1202 = vld [vmem:[%s1146 + $0x29] sm:$0xff]
        %v1203 = vld [vmem:[%s1146 + $0x41] sm:$0xff]
        %v1204 = vld [vmem:[%s1146 + $0x49] sm:$0xff]
        %v1205 = vld [vmem:[%s1146 + $0x61] sm:$0xff]
        %v1206 = vld [vmem:[%s1146 + $0x69] sm:$0xff]
        %v1207 = vld [vmem:[%s1146 + $0x81] sm:$0xff]
        %v1208 = vld [vmem:[%s1146 + $0x89] sm:$0xff]
        %v1209 = vld [vmem:[%s1146 + $0xa1] sm:$0xff]
        %v1210 = vld [vmem:[%s1146 + $0xa9] sm:$0xff]
        %v1211 = vld [vmem:[%s1146 + $0xc1] sm:$0xff]
        %v1212 = vld [vmem:[%s1146 + $0xc9] sm:$0xff]
        %v1213 = vld [vmem:[%s1146 + $0xe1] sm:$0xff]
        %v1214 = vld [vmem:[%s1146 + $0xe9] sm:$0xff]
        %v1215 = vlaneseq
        %v1216 = vshrl.u32 %v1215, 7
        %v1217 = vsub.s32 7, %v1216
        %v1218 = vrot.slane %v831, %v1217
        %v1219 = vmul.f32 %v1199, %v1218
        %v1220 = vmul.f32 %v1200, %v1218
        %v1221 = vmul.f32 %v1201, %v1218
        %v1222 = vmul.f32 %v1202, %v1218
        %v1223 = vmul.f32 %v1203, %v1218
        %v1224 = vmul.f32 %v1204, %v1218
        %v1225 = vmul.f32 %v1205, %v1218
        %v1226 = vmul.f32 %v1206, %v1218
        %v1227 = vmul.f32 %v1207, %v1218
        %v1228 = vmul.f32 %v1208, %v1218
        %v1229 = vmul.f32 %v1209, %v1218
        %v1230 = vmul.f32 %v1210, %v1218
        %v1231 = vmul.f32 %v1211, %v1218
        %v1232 = vmul.f32 %v1212, %v1218
        %v1233 = vmul.f32 %v1213, %v1218
        %v1234 = vmul.f32 %v1214, %v1218
        %v1235 = vadd.f32 %v1183, %v1219
        %v1236 = vadd.f32 %v1184, %v1220
        %v1237 = vadd.f32 %v1185, %v1221
        %v1238 = vadd.f32 %v1186, %v1222
        %v1239 = vadd.f32 %v1187, %v1223
        %v1240 = vadd.f32 %v1188, %v1224
        %v1241 = vadd.f32 %v1189, %v1225
        %v1242 = vadd.f32 %v1190, %v1226
        %v1243 = vadd.f32 %v1191, %v1227
        %v1244 = vadd.f32 %v1192, %v1228
        %v1245 = vadd.f32 %v1193, %v1229
        %v1246 = vadd.f32 %v1194, %v1230
        %v1247 = vadd.f32 %v1195, %v1231
        %v1248 = vadd.f32 %v1196, %v1232
        %v1249 = vadd.f32 %v1197, %v1233
        %v1250 = vadd.f32 %v1198, %v1234
        %v1251 = vld [vmem:[%s1146 + $0x2] sm:$0xff]
        %v1252 = vld [vmem:[%s1146 + $0xa] sm:$0xff]
        %v1253 = vld [vmem:[%s1146 + $0x22] sm:$0xff]
        %v1254 = vld [vmem:[%s1146 + $0x2a] sm:$0xff]
        %v1255 = vld [vmem:[%s1146 + $0x42] sm:$0xff]
        %v1256 = vld [vmem:[%s1146 + $0x4a] sm:$0xff]
        %v1257 = vld [vmem:[%s1146 + $0x62] sm:$0xff]
        %v1258 = vld [vmem:[%s1146 + $0x6a] sm:$0xff]
        %v1259 = vld [vmem:[%s1146 + $0x82] sm:$0xff]
        %v1260 = vld [vmem:[%s1146 + $0x8a] sm:$0xff]
        %v1261 = vld [vmem:[%s1146 + $0xa2] sm:$0xff]
        %v1262 = vld [vmem:[%s1146 + $0xaa] sm:$0xff]
        %v1263 = vld [vmem:[%s1146 + $0xc2] sm:$0xff]
        %v1264 = vld [vmem:[%s1146 + $0xca] sm:$0xff]
        %v1265 = vld [vmem:[%s1146 + $0xe2] sm:$0xff]
        %v1266 = vld [vmem:[%s1146 + $0xea] sm:$0xff]
        %v1267 = vlaneseq
        %v1268 = vshrl.u32 %v1267, 7
        %v1269 = vsub.s32 0, %v1268
        %v1270 = vrot.slane %v832, %v1269
        %v1271 = vmul.f32 %v1251, %v1270
        %v1272 = vmul.f32 %v1252, %v1270
        %v1273 = vmul.f32 %v1253, %v1270
        %v1274 = vmul.f32 %v1254, %v1270
        %v1275 = vmul.f32 %v1255, %v1270
        %v1276 = vmul.f32 %v1256, %v1270
        %v1277 = vmul.f32 %v1257, %v1270
        %v1278 = vmul.f32 %v1258, %v1270
        %v1279 = vmul.f32 %v1259, %v1270
        %v1280 = vmul.f32 %v1260, %v1270
        %v1281 = vmul.f32 %v1261, %v1270
        %v1282 = vmul.f32 %v1262, %v1270
        %v1283 = vmul.f32 %v1263, %v1270
        %v1284 = vmul.f32 %v1264, %v1270
        %v1285 = vmul.f32 %v1265, %v1270
        %v1286 = vmul.f32 %v1266, %v1270
        %v1287 = vadd.f32 %v1235, %v1271
        %v1288 = vadd.f32 %v1236, %v1272
        %v1289 = vadd.f32 %v1237, %v1273
        %v1290 = vadd.f32 %v1238, %v1274
        %v1291 = vadd.f32 %v1239, %v1275
        %v1292 = vadd.f32 %v1240, %v1276
        %v1293 = vadd.f32 %v1241, %v1277
        %v1294 = vadd.f32 %v1242, %v1278
        %v1295 = vadd.f32 %v1243, %v1279
        %v1296 = vadd.f32 %v1244, %v1280
        %v1297 = vadd.f32 %v1245, %v1281
        %v1298 = vadd.f32 %v1246, %v1282
        %v1299 = vadd.f32 %v1247, %v1283
        %v1300 = vadd.f32 %v1248, %v1284
        %v1301 = vadd.f32 %v1249, %v1285
        %v1302 = vadd.f32 %v1250, %v1286
        %v1303 = vld [vmem:[%s3] sm:$0x1]
        %v1305 = vlaneseq
        %v1306 = vshrl.u32 %v1305, 7
        %v1307 = vsub.s32 0, %v1306
        %v1308 = vrot.slane %v1303, %v1307
        %v1310 = vadd.f32 %v1287, %v1308
        %v1311 = vadd.f32 %v1288, %v1308
        %v1312 = vadd.f32 %v1289, %v1308
        %v1313 = vadd.f32 %v1290, %v1308
        %v1314 = vadd.f32 %v1291, %v1308
        %v1315 = vadd.f32 %v1292, %v1308
        %v1316 = vadd.f32 %v1293, %v1308
        %v1317 = vadd.f32 %v1294, %v1308
        %v1318 = vadd.f32 %v1295, %v1308
        %v1319 = vadd.f32 %v1296, %v1308
        %v1320 = vadd.f32 %v1297, %v1308
        %v1321 = vadd.f32 %v1298, %v1308
        %v1322 = vadd.f32 %v1299, %v1308
        %v1323 = vadd.f32 %v1300, %v1308
        %v1324 = vadd.f32 %v1301, %v1308
        %v1325 = vadd.f32 %v1302, %v1308
        %v1326 = vmax.f32 %v1310, 0.0
        %v1327 = vmax.f32 %v1311, 0.0
        %v1328 = vmax.f32 %v1312, 0.0
        %v1329 = vmax.f32 %v1313, 0.0
        %v1330 = vmax.f32 %v1314, 0.0
        %v1331 = vmax.f32 %v1315, 0.0
        %v1332 = vmax.f32 %v1316, 0.0
        %v1333 = vmax.f32 %v1317, 0.0
        %v1334 = vmax.f32 %v1318, 0.0
        %v1335 = vmax.f32 %v1319, 0.0
        %v1336 = vmax.f32 %v1320, 0.0
        %v1337 = vmax.f32 %v1321, 0.0
        %v1338 = vmax.f32 %v1322, 0.0
        %v1339 = vmax.f32 %v1323, 0.0
        %v1340 = vmax.f32 %v1324, 0.0
        %v1341 = vmax.f32 %v1325, 0.0
        %v1342 = vpack.c.bf16 %v1327, %v1326
        %v1343 = vpack.c.bf16 %v1329, %v1328
        %v1344 = vpack.c.bf16 %v1331, %v1330
        %v1345 = vpack.c.bf16 %v1333, %v1332
        %v1346 = vpack.c.bf16 %v1335, %v1334
        %v1347 = vpack.c.bf16 %v1337, %v1336
        %v1348 = vpack.c.bf16 %v1339, %v1338
        %v1349 = vpack.c.bf16 %v1341, %v1340
        %v1350 = vld [vmem:[#allocation9] sm:$0xf]
        %v1351 = vld [vmem:[#allocation9 + $0x4] sm:$0xf]
        %v1352 = vld [vmem:[#allocation9 + $0x8] sm:$0xf]
        %v1353 = vld [vmem:[#allocation9 + $0xc] sm:$0xf]
        %v1354 = vld [vmem:[#allocation9 + $0x10] sm:$0xf]
        %v1355 = vld [vmem:[#allocation9 + $0x14] sm:$0xf]
        %v1356 = vld [vmem:[#allocation9 + $0x18] sm:$0xf]
        %v1357 = vld [vmem:[#allocation9 + $0x1c] sm:$0xf]
        %v1358 = vld [vmem:[#allocation9 + $0x20] sm:$0xf]
        %v1359 = vld [vmem:[#allocation9 + $0x24] sm:$0xf]
        %v1360 = vld [vmem:[#allocation9 + $0x28] sm:$0xf]
        %v1361 = vld [vmem:[#allocation9 + $0x2c] sm:$0xf]
        %v1362 = vld [vmem:[#allocation9 + $0x30] sm:$0xf]
        %v1363 = vld [vmem:[#allocation9 + $0x34] sm:$0xf]
        %v1364 = vld [vmem:[#allocation9 + $0x38] sm:$0xf]
        %v1365 = vld [vmem:[#allocation9 + $0x3c] sm:$0xf]
        %v1366 = vld [vmem:[%s5] sm:$0x1]
        %v1368 = vlaneseq
        %v1369 = vshrl.u32 %v1368, 7
        %v1370 = vsub.s32 0, %v1369
        %v1371 = vrot.slane %v1366, %v1370
        %v1389 = vunpack.c.l.b16 %v1350
        %v1390 = vunpack.c.l.b16 %v1351
        %v1391 = vunpack.c.l.b16 %v1352
        %v1392 = vunpack.c.l.b16 %v1353
        %v1393 = vunpack.c.l.b16 %v1354
        %v1394 = vunpack.c.l.b16 %v1355
        %v1395 = vunpack.c.l.b16 %v1356
        %v1396 = vunpack.c.l.b16 %v1357
        %v1397 = vunpack.c.l.b16 %v1358
        %v1398 = vunpack.c.l.b16 %v1359
        %v1399 = vunpack.c.l.b16 %v1360
        %v1400 = vunpack.c.l.b16 %v1361
        %v1401 = vunpack.c.l.b16 %v1362
        %v1402 = vunpack.c.l.b16 %v1363
        %v1403 = vunpack.c.l.b16 %v1364
        %v1404 = vunpack.c.l.b16 %v1365
        %v1405 = vpack.c.b16 %v1390, %v1389
        %v1406 = vpack.c.b16 %v1392, %v1391
        %v1407 = vpack.c.b16 %v1394, %v1393
        %v1408 = vpack.c.b16 %v1396, %v1395
        %v1409 = vpack.c.b16 %v1398, %v1397
        %v1410 = vpack.c.b16 %v1400, %v1399
        %v1411 = vpack.c.b16 %v1402, %v1401
        %v1412 = vpack.c.b16 %v1404, %v1403
        %1421 = vmatprep.subr.bf16.mxu0 0
        %1422 = vmatpush1.bf16.msra.mxu0 %v1412
        %1423 = vmatprep.subr.bf16.mxu0 0
        %1424 = vmatpush1.bf16.msra.mxu0 %v1411
        %1425 = vmatprep.subr.bf16.mxu0 0
        %1426 = vmatpush1.bf16.msra.mxu0 %v1410
        %1427 = vmatprep.subr.bf16.mxu0 0
        %1428 = vmatpush1.bf16.msra.mxu0 %v1409
        %1429 = vmatprep.subr.bf16.mxu0 0
        %1430 = vmatpush1.bf16.msra.mxu0 %v1408
        %1431 = vmatprep.subr.bf16.mxu0 0
        %1432 = vmatpush1.bf16.msra.mxu0 %v1407
        %1433 = vmatprep.subr.bf16.mxu0 0
        %1434 = vmatpush1.bf16.msra.mxu0 %v1406
        %1435 = vmatprep.subr.bf16.mxu0 0
        %1436 = vmatpush1.bf16.msra.mxu0 %v1405
        %1437 = vmatprep.subr.bf16.mxu0 0
        %1438 = vmatpush2.bf16.msra.mxu0 0
        %1439 = vmatprep.subr.bf16.mxu0 0
        %1440 = vmatpush2.bf16.msra.mxu0 0
        %1441 = vmatprep.subr.bf16.mxu0 0
        %1442 = vmatpush2.bf16.msra.mxu0 0
        %1443 = vmatprep.subr.bf16.mxu0 0
        %1444 = vmatpush2.bf16.msra.mxu0 0
        %1445 = vmatprep.subr.bf16.mxu0 0
        %1446 = vmatpush2.bf16.msra.mxu0 0
        %1447 = vmatprep.subr.bf16.mxu0 0
        %1448 = vmatpush2.bf16.msra.mxu0 0
        %1449 = vmatprep.subr.bf16.mxu0 0
        %1450 = vmatpush2.bf16.msra.mxu0 0
        %1451 = vmatprep.subr.bf16.mxu0 0
        %1452 = vmatpush2.bf16.msra.mxu0 0
        %1453 = vmatprep.mubr.bf16.mxu0 0
        %1454 = vmatmul.mubr.bf16.gmra.mxu0 %v1342
        %v1455 = vpop.f32.mrf.mxu0
        %v1456 = vadd.f32 %v1371, %v1455
        %v1457 = vpop.f32.mrf.mxu0
        %v1458 = vpop.f32.mrf.mxu0
        %v1459 = vadd.f32 %v1371, %v1458
        %v1460 = vpop.f32.mrf.mxu0
        %1461 = vmatprep.mubr.bf16.mxu0 0
        %1462 = vmatmul.mubr.bf16.gmra.mxu0 %v1343
        %v1463 = vpop.f32.mrf.mxu0
        %v1464 = vadd.f32 %v1371, %v1463
        %v1465 = vpop.f32.mrf.mxu0
        %v1466 = vpop.f32.mrf.mxu0
        %v1467 = vadd.f32 %v1371, %v1466
        %v1468 = vpop.f32.mrf.mxu0
        %1469 = vmatprep.mubr.bf16.mxu0 0
        %1470 = vmatmul.mubr.bf16.gmra.mxu0 %v1344
        %v1471 = vpop.f32.mrf.mxu0
        %v1472 = vadd.f32 %v1371, %v1471
        %v1473 = vpop.f32.mrf.mxu0
        %v1474 = vpop.f32.mrf.mxu0
        %v1475 = vadd.f32 %v1371, %v1474
        %v1476 = vpop.f32.mrf.mxu0
        %1477 = vmatprep.mubr.bf16.mxu0 0
        %1478 = vmatmul.mubr.bf16.gmra.mxu0 %v1345
        %v1479 = vpop.f32.mrf.mxu0
        %v1480 = vadd.f32 %v1371, %v1479
        %v1481 = vpop.f32.mrf.mxu0
        %v1482 = vpop.f32.mrf.mxu0
        %v1483 = vadd.f32 %v1371, %v1482
        %v1484 = vpop.f32.mrf.mxu0
        %1485 = vmatprep.mubr.bf16.mxu0 0
        %1486 = vmatmul.mubr.bf16.gmra.mxu0 %v1346
        %v1487 = vpop.f32.mrf.mxu0
        %v1488 = vadd.f32 %v1371, %v1487
        %v1489 = vpop.f32.mrf.mxu0
        %v1490 = vpop.f32.mrf.mxu0
        %v1491 = vadd.f32 %v1371, %v1490
        %v1492 = vpop.f32.mrf.mxu0
        %1493 = vmatprep.mubr.bf16.mxu0 0
        %1494 = vmatmul.mubr.bf16.gmra.mxu0 %v1347
        %v1495 = vpop.f32.mrf.mxu0
        %v1496 = vadd.f32 %v1371, %v1495
        %v1497 = vpop.f32.mrf.mxu0
        %v1498 = vpop.f32.mrf.mxu0
        %v1499 = vadd.f32 %v1371, %v1498
        %v1500 = vpop.f32.mrf.mxu0
        %1501 = vmatprep.mubr.bf16.mxu0 0
        %1502 = vmatmul.mubr.bf16.gmra.mxu0 %v1348
        %v1503 = vpop.f32.mrf.mxu0
        %v1504 = vadd.f32 %v1371, %v1503
        %v1505 = vpop.f32.mrf.mxu0
        %v1506 = vpop.f32.mrf.mxu0
        %v1507 = vadd.f32 %v1371, %v1506
        %v1508 = vpop.f32.mrf.mxu0
        %1509 = vmatprep.mubr.bf16.mxu0 0
        %1510 = vmatmul.mubr.bf16.gmra.mxu0 %v1349
        %v1511 = vpop.f32.mrf.mxu0
        %v1512 = vadd.f32 %v1371, %v1511
        %v1513 = vpop.f32.mrf.mxu0
        %v1514 = vpop.f32.mrf.mxu0
        %v1515 = vadd.f32 %v1371, %v1514
        %v1516 = vpop.f32.mrf.mxu0
        %1517 = vdwg.mxu0
        %s1518 = sadd.s32 %s330, 1
        %s1519 = smul.u32 %s1518, 4
        %s1520 = smul.addr %s1519, 4
        %s1521 = scalar_lea.vmem %s287, %s1520 [#allocation3]
        %v1522 = vld [vmem:[%s1521] sm:$0xf]
        %v1523 = vld [vmem:[%s1521 + $0x4] sm:$0xf]
        %v1524 = vld [vmem:[%s1521 + $0x8] sm:$0x1]
        %v1525 = vld [vmem:[%s1521 + $0x10] sm:$0xf]
        %v1526 = vld [vmem:[%s1521 + $0x14] sm:$0xf]
        %v1527 = vld [vmem:[%s1521 + $0x18] sm:$0x1]
        %v1528 = vld [vmem:[%s1521 + $0x20] sm:$0xf]
        %v1529 = vld [vmem:[%s1521 + $0x24] sm:$0xf]
        %v1530 = vld [vmem:[%s1521 + $0x28] sm:$0x1]
        %v1531 = vld [vmem:[%s1521 + $0x30] sm:$0xf]
        %v1532 = vld [vmem:[%s1521 + $0x34] sm:$0xf]
        %v1533 = vld [vmem:[%s1521 + $0x38] sm:$0x1]
        %v1534 = vld [vmem:[%s1521 + $0x40] sm:$0xf]
        %v1535 = vld [vmem:[%s1521 + $0x44] sm:$0xf]
        %v1536 = vld [vmem:[%s1521 + $0x48] sm:$0x1]
        %v1537 = vld [vmem:[%s1521 + $0x50] sm:$0xf]
        %v1538 = vld [vmem:[%s1521 + $0x54] sm:$0xf]
        %v1539 = vld [vmem:[%s1521 + $0x58] sm:$0x1]
        %v1540 = vld [vmem:[%s1521 + $0x60] sm:$0xf]
        %v1541 = vld [vmem:[%s1521 + $0x64] sm:$0xf]
        %v1542 = vld [vmem:[%s1521 + $0x68] sm:$0x1]
        %v1543 = vld [vmem:[%s1521 + $0x70] sm:$0xf]
        %v1544 = vld [vmem:[%s1521 + $0x74] sm:$0xf]
        %v1545 = vld [vmem:[%s1521 + $0x78] sm:$0x1]
        %v1546 = vunpack.c.l.bf16 %v1522
        %v1547 = vunpack.c.l.bf16 %v1523
        %v1548 = vunpack.c.l.bf16 %v1524
        %v1549 = vunpack.c.l.bf16 %v1525
        %v1550 = vunpack.c.l.bf16 %v1526
        %v1551 = vunpack.c.l.bf16 %v1527
        %v1552 = vunpack.c.l.bf16 %v1528
        %v1553 = vunpack.c.l.bf16 %v1529
        %v1554 = vunpack.c.l.bf16 %v1530
        %v1555 = vunpack.c.l.bf16 %v1531
        %v1556 = vunpack.c.l.bf16 %v1532
        %v1557 = vunpack.c.l.bf16 %v1533
        %v1558 = vunpack.c.l.bf16 %v1534
        %v1559 = vunpack.c.l.bf16 %v1535
        %v1560 = vunpack.c.l.bf16 %v1536
        %v1561 = vunpack.c.l.bf16 %v1537
        %v1562 = vunpack.c.l.bf16 %v1538
        %v1563 = vunpack.c.l.bf16 %v1539
        %v1564 = vunpack.c.l.bf16 %v1540
        %v1565 = vunpack.c.l.bf16 %v1541
        %v1566 = vunpack.c.l.bf16 %v1542
        %v1567 = vunpack.c.l.bf16 %v1543
        %v1568 = vunpack.c.l.bf16 %v1544
        %v1569 = vunpack.c.l.bf16 %v1545
        %vm1594 = vcmask 1046528
        %v1595 = vrot.slane %v1546, 1
        %v1596 = vrot.slane %v1547, 1
        %v1597 = vsel %vm1594, %v1595, %v1596
        %v1598 = vrot.slane %v1548, 1
        %v1599 = vsel %vm1594, %v1596, %v1598
        %v1600 = vrot.slane %v1549, 1
        %v1601 = vrot.slane %v1550, 1
        %v1602 = vsel %vm1594, %v1600, %v1601
        %v1603 = vrot.slane %v1551, 1
        %v1604 = vsel %vm1594, %v1601, %v1603
        %v1605 = vrot.slane %v1552, 1
        %v1606 = vrot.slane %v1553, 1
        %v1607 = vsel %vm1594, %v1605, %v1606
        %v1608 = vrot.slane %v1554, 1
        %v1609 = vsel %vm1594, %v1606, %v1608
        %v1610 = vrot.slane %v1555, 1
        %v1611 = vrot.slane %v1556, 1
        %v1612 = vsel %vm1594, %v1610, %v1611
        %v1613 = vrot.slane %v1557, 1
        %v1614 = vsel %vm1594, %v1611, %v1613
        %v1615 = vrot.slane %v1558, 1
        %v1616 = vrot.slane %v1559, 1
        %v1617 = vsel %vm1594, %v1615, %v1616
        %v1618 = vrot.slane %v1560, 1
        %v1619 = vsel %vm1594, %v1616, %v1618
        %v1620 = vrot.slane %v1561, 1
        %v1621 = vrot.slane %v1562, 1
        %v1622 = vsel %vm1594, %v1620, %v1621
        %v1623 = vrot.slane %v1563, 1
        %v1624 = vsel %vm1594, %v1621, %v1623
        %v1625 = vrot.slane %v1564, 1
        %v1626 = vrot.slane %v1565, 1
        %v1627 = vsel %vm1594, %v1625, %v1626
        %v1628 = vrot.slane %v1566, 1
        %v1629 = vsel %vm1594, %v1626, %v1628
        %v1630 = vrot.slane %v1567, 1
        %v1631 = vrot.slane %v1568, 1
        %v1632 = vsel %vm1594, %v1630, %v1631
        %v1633 = vrot.slane %v1569, 1
        %v1634 = vsel %vm1594, %v1631, %v1633
        %v1651 = vadd.f32 %v1456, %v1597
        %v1652 = vadd.f32 %v1459, %v1599
        %v1653 = vadd.f32 %v1464, %v1602
        %v1654 = vadd.f32 %v1467, %v1604
        %v1655 = vadd.f32 %v1472, %v1607
        %v1656 = vadd.f32 %v1475, %v1609
        %v1657 = vadd.f32 %v1480, %v1612
        %v1658 = vadd.f32 %v1483, %v1614
        %v1659 = vadd.f32 %v1488, %v1617
        %v1660 = vadd.f32 %v1491, %v1619
        %v1661 = vadd.f32 %v1496, %v1622
        %v1662 = vadd.f32 %v1499, %v1624
        %v1663 = vadd.f32 %v1504, %v1627
        %v1664 = vadd.f32 %v1507, %v1629
        %v1665 = vadd.f32 %v1512, %v1632
        %v1666 = vadd.f32 %v1515, %v1634
        %v1667 = vpack.c.bf16 %v1652, %v1651
        %v1668 = vpack.c.bf16 %v1654, %v1653
        %v1669 = vpack.c.bf16 %v1656, %v1655
        %v1670 = vpack.c.bf16 %v1658, %v1657
        %v1671 = vpack.c.bf16 %v1660, %v1659
        %v1672 = vpack.c.bf16 %v1662, %v1661
        %v1673 = vpack.c.bf16 %v1664, %v1663
        %v1674 = vpack.c.bf16 %v1666, %v1665
        %v1683 = vunpack.c.l.b16 %v1667
        %v1684 = vunpack.c.h.b16 %v1667
        %v1685 = vunpack.c.l.b16 %v1668
        %v1686 = vunpack.c.h.b16 %v1668
        %v1687 = vunpack.c.l.b16 %v1669
        %v1688 = vunpack.c.h.b16 %v1669
        %v1689 = vunpack.c.l.b16 %v1670
        %v1690 = vunpack.c.h.b16 %v1670
        %v1691 = vunpack.c.l.b16 %v1671
        %v1692 = vunpack.c.h.b16 %v1671
        %v1693 = vunpack.c.l.b16 %v1672
        %v1694 = vunpack.c.h.b16 %v1672
        %v1695 = vunpack.c.l.b16 %v1673
        %v1696 = vunpack.c.h.b16 %v1673
        %v1697 = vunpack.c.l.b16 %v1674
        %v1698 = vunpack.c.h.b16 %v1674
        %v1699 = vpack.c.b16 %v1683, %v1683
        %v1700 = vpack.c.b16 %v1684, %v1684
        %v1701 = vpack.c.b16 %v1685, %v1685
        %v1702 = vpack.c.b16 %v1686, %v1686
        %v1703 = vpack.c.b16 %v1687, %v1687
        %v1704 = vpack.c.b16 %v1688, %v1688
        %v1705 = vpack.c.b16 %v1689, %v1689
        %v1706 = vpack.c.b16 %v1690, %v1690
        %v1707 = vpack.c.b16 %v1691, %v1691
        %v1708 = vpack.c.b16 %v1692, %v1692
        %v1709 = vpack.c.b16 %v1693, %v1693
        %v1710 = vpack.c.b16 %v1694, %v1694
        %v1711 = vpack.c.b16 %v1695, %v1695
        %v1712 = vpack.c.b16 %v1696, %v1696
        %v1713 = vpack.c.b16 %v1697, %v1697
        %v1714 = vpack.c.b16 %v1698, %v1698
        %1731 = vst [vmem:[%s327] sm:$0xf] %v1699
        %1732 = vst [vmem:[%s327 + $0x4] sm:$0xf] %v1700
        %1733 = vst [vmem:[%s327 + $0x8] sm:$0xf] %v1701
        %1734 = vst [vmem:[%s327 + $0xc] sm:$0xf] %v1702
        %1735 = vst [vmem:[%s327 + $0x10] sm:$0xf] %v1703
        %1736 = vst [vmem:[%s327 + $0x14] sm:$0xf] %v1704
        %1737 = vst [vmem:[%s327 + $0x18] sm:$0xf] %v1705
        %1738 = vst [vmem:[%s327 + $0x1c] sm:$0xf] %v1706
        %1739 = vst [vmem:[%s327 + $0x20] sm:$0xf] %v1707
        %1740 = vst [vmem:[%s327 + $0x24] sm:$0xf] %v1708
        %1741 = vst [vmem:[%s327 + $0x28] sm:$0xf] %v1709
        %1742 = vst [vmem:[%s327 + $0x2c] sm:$0xf] %v1710
        %1743 = vst [vmem:[%s327 + $0x30] sm:$0xf] %v1711
        %1744 = vst [vmem:[%s327 + $0x34] sm:$0xf] %v1712
        %1745 = vst [vmem:[%s327 + $0x38] sm:$0xf] %v1713
        %1746 = vst [vmem:[%s327 + $0x3c] sm:$0xf] %v1714
        %s1747 = sand.u32 %s178, 1
        %s1748 = scalar_lea.sflag [#allocation5], %s1747
        %s1749 = sand.u32 %s178, 1
        %s1750 = smul.addr %s1749, 64
        %s1751 = scalar_lea.vmem [#allocation11], %s1750
        // Predicated region
        $region61: #{tpu_custom_call.1} parent=43 // pred_check
          %p1752 = pneg %p188
        $region62: #{tpu_custom_call.1} parent=43 // pred_check_branch
          %1754 = sbr.rel (%p1752) target = $region64
        $region63: #{tpu_custom_call.1} parent=43 // pred_region
          %s1755 = smul.u32 8, %s30
          %s1757 = ssub.s32 1024, 1024
          %1758 = vsyncadd %s1748, %s1757
          %s1759 = smul.addr %s1755, 2
          %s1760 = smul.addr %s29, 32
          %s1761 = sadd.s32 %s1759, %s1760
          %s1762 = smul.addr %s1761, 64
          %s1763 = scalar_lea.hbm %s6, %s1762
          %s1764 = sshll.u32 %s1751, 4
          %s1765 = int_to_ptr.vmem [resolvable:$true] %s1764
          %1770 = dma.vmem_to_hbm [thread:$0]  %s1765, 1024, %s1763, %s1748, 64, 64, 4
        $region64: #{tpu_custom_call.1} parent=43 // pred_fallthru
          _
      $region44: #{tpu_custom_call.1} parent=5 // pred_fallthru
        _
      %p1771 = scmp.le.s32.totalorder 2, %s20
      // Predicated region
      $region65: #{tpu_custom_call.1} parent=5 // pred_check
        %p1772 = pneg %p1771
      $region66: #{tpu_custom_call.1} parent=5 // pred_check_branch
        %1774 = sbr.rel (%p1772) target = $region68
      $region67: #{tpu_custom_call.1} parent=5 // pred_region
        %s1775 = ssub.s32 %s20, 2
        // Predicated region
        $region69: #{tpu_custom_call.1} parent=67 // pred_check
          %p1776 = pneg %p194
        $region70: #{tpu_custom_call.1} parent=67 // pred_check_branch
          %1778 = sbr.rel (%p1776) target = $region72
        $region71: #{tpu_custom_call.1} parent=67 // pred_region
          %s1779 = sand.u32 %s179, 1
          %s1780 = scalar_lea.sflag [#allocation5], %s1779
          %s1781 = sand.u32 %s179, 1
          %s1782 = smul.addr %s1781, 64
          %s1783 = scalar_lea.vmem [#allocation11], %s1782
          %1784 = dma.done %s1780, 1024
        $region72: #{tpu_custom_call.1} parent=67 // pred_fallthru
          _
      $region68: #{tpu_custom_call.1} parent=5 // pred_fallthru
        _
    $region6: #{tpu_custom_call.1} parent=1 // loop_footer
      %s24 = sadd.s32 1, %s20
    $region7: #{tpu_custom_call.1} parent=1 // loop_footer_branch
      %19 = sbr.rel target = $region3
    $region8: #{tpu_custom_call.1} parent=1 // loop_exit
      _
    %1785 = vsyncpa [#allocation4], 1
    %s1786 = scalar_lea.sflag [#allocation4], 1
    %1787 = vsyncpa %s1786, 1
    %1788 = vsyncpa [#allocation7], 1
    %1789 = vsyncpa [#allocation10], 1
    %1790 = vsyncpa [#allocation5], 1
    %s1791 = scalar_lea.sflag [#allocation5], 1
    %1792 = vsyncpa %s1791, 1

</llo_original>
